<compile_context>
chip_gen: v5e
topology: v5e:2x2
jax: 0.10.0
libtpu: 0.0.40
codegen_flags: <defaults>
</compile_context>

<pallas_src>
import functools

import jax
import jax.numpy as jnp
from jax.experimental import pallas as pl
from jax.experimental.pallas import tpu as pltpu

EPS_LN = 1e-6


# ----------------------------- fused kernel --------------------------------

def _layernorm(x, g, b):
    # single-pass statistics: both cross-lane reductions are independent
    mu = jnp.mean(x, axis=-1, keepdims=True)
    ms = jnp.mean(x * x, axis=-1, keepdims=True)
    var = ms - mu * mu
    return (x - mu) * jax.lax.rsqrt(var + EPS_LN) * g + b


def _block_kernel(num_heads,
                  x_ref,
                  wqkv_ref,                    # (E, 3E)  bf16, scale folded into q cols
                  wp_ref, bp_ref,              # (E, E) bf16, (1, E) f32
                  g1_ref, b1_ref, g2_ref, b2_ref,
                  w1_ref, bb1_ref,             # (E, hid) bf16, (1, hid) f32
                  w2_ref, bb2_ref,             # (hid, E) bf16, (1, E)  f32
                  o_ref):
    x = x_ref[0].astype(jnp.float32)           # (N, E)
    N, E = x.shape
    hd = E // num_heads

    # ---------------- norm1 + fused qkv + multi-head attention -------------
    xn = _layernorm(x, g1_ref[...], b1_ref[...])

    qkv = jnp.dot(xn.astype(jnp.bfloat16), wqkv_ref[...],
                  preferred_element_type=jnp.float32)        # (N, 3E) f32

    head_outs = []
    for h in range(num_heads):                 # static unroll (tiny head count)
        lo = h * hd
        qh = qkv[:, lo:lo + hd]                # scale already folded into weight
        kh = qkv[:, E + lo:E + lo + hd]
        vh = qkv[:, 2 * E + lo:2 * E + lo + hd]

        s = jax.lax.dot_general(qh.astype(jnp.bfloat16), kh.astype(jnp.bfloat16),
                                (((1,), (1,)), ((), ())),
                                preferred_element_type=jnp.float32)   # (N, N)
        s = s - jnp.max(s, axis=-1, keepdims=True)
        p = jnp.exp(s)
        p = p * pl.reciprocal(jnp.sum(p, axis=-1, keepdims=True), approx=True)

        head_outs.append(jnp.dot(p.astype(jnp.bfloat16), vh.astype(jnp.bfloat16),
                                 preferred_element_type=jnp.float32))  # (N, hd)

    attn_out = jnp.concatenate(head_outs, axis=-1)           # (N, E), lane-packed

    proj = jnp.dot(attn_out.astype(jnp.bfloat16), wp_ref[...],
                   preferred_element_type=jnp.float32) + bp_ref[...]
    x1 = x + proj                              # residual 1

    # ---------------- norm2 + MLP -------------------------------------------
    xn2 = _layernorm(x1, g2_ref[...], b2_ref[...])
    h1 = jnp.dot(xn2.astype(jnp.bfloat16), w1_ref[...],
                 preferred_element_type=jnp.float32) + bb1_ref[...]
    # TODO(synk): nn.GELU default is exact erf-GELU; tanh approximation is used
    # because erf is not guaranteed to lower in Mosaic.
    h1 = jax.nn.gelu(h1, approximate=True)
    y2 = jnp.dot(h1.astype(jnp.bfloat16), w2_ref[...],
                 preferred_element_type=jnp.float32) + bb2_ref[...]

    o_ref[0] = (x1 + y2).astype(o_ref.dtype)   # residual 2


# ----------------------------- wrapper --------------------------------------

def _const_spec(shape):
    zeros = (0,) * len(shape)
    return pl.BlockSpec(shape, lambda b, _z=zeros: _z)


def block_forward(x, params, num_heads):
    """Fused forward of the transformer Block.  x: (B, N, E)."""
    B, N, E = x.shape
    hd = E // num_heads
    scale = hd ** (-0.5)

    # Fold the attention scale into the q columns of the fused qkv weight
    # (done once, in f32, before casting to bf16).
    wqkv = params['qkv_w']
    wqkv = jnp.concatenate([wqkv[:, :E] * scale, wqkv[:, E:]], axis=1)

    bf16 = lambda a: a.astype(jnp.bfloat16)
    row = lambda a: a.reshape(1, -1).astype(jnp.float32)

    args = [
        x,                                        # native dtype, cast in-kernel
        bf16(wqkv),
        bf16(params['proj_w']), row(params['proj_b']),
        row(params['norm1_g']), row(params['norm1_b']),
        row(params['norm2_g']), row(params['norm2_b']),
        bf16(params['fc1_w']), row(params['fc1_b']),
        bf16(params['fc2_w']), row(params['fc2_b']),
    ]

    in_specs = [pl.BlockSpec((1, N, E), lambda b: (b, 0, 0))]
    in_specs += [_const_spec(a.shape) for a in args[1:]]

    kernel = functools.partial(_block_kernel, num_heads)
    return pl.pallas_call(
        kernel,
        out_shape=jax.ShapeDtypeStruct((B, N, E), x.dtype),
        grid=(B,),
        in_specs=in_specs,
        out_specs=pl.BlockSpec((1, N, E), lambda b: (b, 0, 0)),
        compiler_params=pltpu.CompilerParams(
            dimension_semantics=("parallel",)),
    )(*args)


# ----------------------------- pure-JAX reference ----------------------------

def block_reference(x, params, num_heads):
    B, N, E = x.shape
    hd = E // num_heads
    scale = hd ** (-0.5)

    def ln(v, g, b):
        mu = v.mean(-1, keepdims=True)
        var = ((v - mu) ** 2).mean(-1, keepdims=True)
        return (v - mu) / jnp.sqrt(var + EPS_LN) * g + b

    xn = ln(x, params['norm1_g'], params['norm1_b'])
    qkv = (xn @ params['qkv_w']).reshape(B, N, 3, num_heads, hd).transpose(2, 0, 3, 1, 4)
    q, k, v = qkv[0], qkv[1], qkv[2]                     # (B, H, N, hd)
    s = jnp.einsum('bhnd,bhmd->bhnm', q, k) * scale
    p = jax.nn.softmax(s, axis=-1)
    o = jnp.einsum('bhnm,bhmd->bhnd', p, v).transpose(0, 2, 1, 3).reshape(B, N, E)
    x1 = x + o @ params['proj_w'] + params['proj_b']
    xn2 = ln(x1, params['norm2_g'], params['norm2_b'])
    h1 = jax.nn.gelu(xn2 @ params['fc1_w'] + params['fc1_b'], approximate=True)
    return x1 + h1 @ params['fc2_w'] + params['fc2_b']


# ----------------------------- params & main ---------------------------------

def make_block_params(key, dim, mlp_ratio=4.0):
    hid = int(dim * mlp_ratio)
    ks = jax.random.split(key, 11)
    r = lambda k, s, sc=0.05: jax.random.normal(k, s, dtype=jnp.float32) * sc
    return {
        'norm1_g': 1.0 + r(ks[0], (dim,)), 'norm1_b': r(ks[1], (dim,)),
        'qkv_w': r(ks[2], (dim, 3 * dim)),                # qkv_bias=False
        'proj_w': r(ks[3], (dim, dim)), 'proj_b': r(ks[4], (dim,)),
        'norm2_g': 1.0 + r(ks[5], (dim,)), 'norm2_b': r(ks[6], (dim,)),
        'fc1_w': r(ks[7], (dim, hid)), 'fc1_b': r(ks[8], (hid,)),
        'fc2_w': r(ks[9], (hid, dim)), 'fc2_b': r(ks[10], (dim,)),
    }


if __name__ == "__main__":
    B, N, E, num_heads = 2, 32, 128, 4        # head_dim=32, mlp hidden=512

    root = jax.random.PRNGKey(0)
    kx, kp = jax.random.split(root)
    x = jax.random.normal(kx, (B, N, E), dtype=jnp.float32)
    params = make_block_params(kp, E)

    out = block_forward(x, params, num_heads)
    out = jax.block_until_ready(out)

    ref = block_reference(x, params, num_heads)
    assert out.shape == (B, N, E)
    assert bool(jnp.all(jnp.isfinite(out)))
    assert bool(jnp.allclose(out, ref, atol=5e-2, rtol=5e-2)), \
        float(jnp.max(jnp.abs(out - ref)))
    print("KERNEL_OK")
</pallas_src>

<mosaic_0001>
module attributes {stable_mosaic.version = 11 : i64} {
  func.func @_block_kernel(%arg0: i32, %arg1: memref<1x32x128xf32, #tpu.memory_space<vmem>>, %arg2: memref<128x384xbf16, #tpu.memory_space<vmem>>, %arg3: memref<128x128xbf16, #tpu.memory_space<vmem>>, %arg4: memref<1x128xf32, #tpu.memory_space<vmem>>, %arg5: memref<1x128xf32, #tpu.memory_space<vmem>>, %arg6: memref<1x128xf32, #tpu.memory_space<vmem>>, %arg7: memref<1x128xf32, #tpu.memory_space<vmem>>, %arg8: memref<1x128xf32, #tpu.memory_space<vmem>>, %arg9: memref<128x512xbf16, #tpu.memory_space<vmem>>, %arg10: memref<1x512xf32, #tpu.memory_space<vmem>>, %arg11: memref<512x128xbf16, #tpu.memory_space<vmem>>, %arg12: memref<1x128xf32, #tpu.memory_space<vmem>>, %arg13: memref<1x32x128xf32, #tpu.memory_space<vmem>>) attributes {dimension_semantics = [#tpu.dimension_semantics<parallel>], iteration_bounds = array<i64: 2>, scalar_prefetch = 0 : i64, scratch_operands = 0 : i64, tpu.core_type = #tpu.core_type<tc>, window_params = [{transform_indices = @transform_0, window_bounds = array<i64: 1, 32, 128>}, {pipeline_mode = #tpu.pipeline_mode<synchronous>, transform_indices = @transform_1, window_bounds = array<i64: 128, 384>}, {pipeline_mode = #tpu.pipeline_mode<synchronous>, transform_indices = @transform_2, window_bounds = array<i64: 128, 128>}, {pipeline_mode = #tpu.pipeline_mode<synchronous>, transform_indices = @transform_3, window_bounds = array<i64: 1, 128>}, {pipeline_mode = #tpu.pipeline_mode<synchronous>, transform_indices = @transform_4, window_bounds = array<i64: 1, 128>}, {pipeline_mode = #tpu.pipeline_mode<synchronous>, transform_indices = @transform_5, window_bounds = array<i64: 1, 128>}, {pipeline_mode = #tpu.pipeline_mode<synchronous>, transform_indices = @transform_6, window_bounds = array<i64: 1, 128>}, {pipeline_mode = #tpu.pipeline_mode<synchronous>, transform_indices = @transform_7, window_bounds = array<i64: 1, 128>}, {pipeline_mode = #tpu.pipeline_mode<synchronous>, transform_indices = @transform_8, window_bounds = array<i64: 128, 512>}, {pipeline_mode = #tpu.pipeline_mode<synchronous>, transform_indices = @transform_9, window_bounds = array<i64: 1, 512>}, {pipeline_mode = #tpu.pipeline_mode<synchronous>, transform_indices = @transform_10, window_bounds = array<i64: 512, 128>}, {pipeline_mode = #tpu.pipeline_mode<synchronous>, transform_indices = @transform_11, window_bounds = array<i64: 1, 128>}, {transform_indices = @transform_12, window_bounds = array<i64: 1, 32, 128>}]} {
    %c0 = arith.constant 0 : index
    %c0_0 = arith.constant 0 : index
    %c0_1 = arith.constant 0 : index
    %0 = vector.load %arg1[%c0, %c0_0, %c0_1] : memref<1x32x128xf32, #tpu.memory_space<vmem>>, vector<1x32x128xf32>
    %1 = vector.shape_cast %0 : vector<1x32x128xf32> to vector<32x128xf32>
    %c0_2 = arith.constant 0 : index
    %c0_3 = arith.constant 0 : index
    %2 = vector.load %arg5[%c0_2, %c0_3] : memref<1x128xf32, #tpu.memory_space<vmem>>, vector<1x128xf32>
    %c0_4 = arith.constant 0 : index
    %c0_5 = arith.constant 0 : index
    %3 = vector.load %arg6[%c0_4, %c0_5] : memref<1x128xf32, #tpu.memory_space<vmem>>, vector<1x128xf32>
    %cst = arith.constant dense<0.000000e+00> : vector<32xf32>
    %4 = vector.multi_reduction <add>, %1, %cst [1] : vector<32x128xf32> to vector<32xf32>
    %5 = vector.shape_cast %4 : vector<32xf32> to vector<32x1xf32>
    %cst_6 = arith.constant 1.280000e+02 : f32
    %6 = vector.broadcast %cst_6 : f32 to vector<32x1xf32>
    %7 = arith.divf %5, %6 : vector<32x1xf32>
    %8 = arith.mulf %1, %1 : vector<32x128xf32>
    %cst_7 = arith.constant dense<0.000000e+00> : vector<32xf32>
    %9 = vector.multi_reduction <add>, %8, %cst_7 [1] : vector<32x128xf32> to vector<32xf32>
    %10 = vector.shape_cast %9 : vector<32xf32> to vector<32x1xf32>
    %cst_8 = arith.constant 1.280000e+02 : f32
    %11 = vector.broadcast %cst_8 : f32 to vector<32x1xf32>
    %12 = arith.divf %10, %11 : vector<32x1xf32>
    %13 = arith.mulf %7, %7 : vector<32x1xf32>
    %14 = arith.subf %12, %13 : vector<32x1xf32>
    %15 = vector.broadcast %7 : vector<32x1xf32> to vector<32x128xf32>
    %16 = arith.subf %1, %15 : vector<32x128xf32>
    %cst_9 = arith.constant 9.99999997E-7 : f32
    %17 = vector.broadcast %cst_9 : f32 to vector<32x1xf32>
    %18 = arith.addf %14, %17 : vector<32x1xf32>
    %19 = math.rsqrt %18 : vector<32x1xf32>
    %20 = vector.broadcast %19 : vector<32x1xf32> to vector<32x128xf32>
    %21 = arith.mulf %16, %20 : vector<32x128xf32>
    %22 = vector.broadcast %2 : vector<1x128xf32> to vector<32x128xf32>
    %23 = arith.mulf %21, %22 : vector<32x128xf32>
    %24 = vector.broadcast %3 : vector<1x128xf32> to vector<32x128xf32>
    %25 = arith.addf %23, %24 : vector<32x128xf32>
    %26 = arith.truncf %25 : vector<32x128xf32> to vector<32x128xbf16>
    %c0_10 = arith.constant 0 : index
    %c0_11 = arith.constant 0 : index
    %27 = vector.load %arg2[%c0_10, %c0_11] : memref<128x384xbf16, #tpu.memory_space<vmem>>, vector<128x384xbf16>
    %cst_12 = arith.constant dense<0.000000e+00> : vector<32x384xf32>
    %28 = tpu.matmul %26, %27, %cst_12 {dimension_numbers = #tpu.dot_dimension_numbers<[1], [0], [0], [1], [0, 0, 1, 1], [], []>} : vector<32x128xbf16>, vector<128x384xbf16>, vector<32x384xf32> -> vector<32x384xf32>
    %29 = vector.extract_strided_slice %28 {offsets = [0, 0], sizes = [32, 32], strides = [1, 1]} : vector<32x384xf32> to vector<32x32xf32>
    %30 = vector.extract_strided_slice %28 {offsets = [0, 128], sizes = [32, 32], strides = [1, 1]} : vector<32x384xf32> to vector<32x32xf32>
    %31 = vector.extract_strided_slice %28 {offsets = [0, 256], sizes = [32, 32], strides = [1, 1]} : vector<32x384xf32> to vector<32x32xf32>
    %32 = arith.truncf %29 : vector<32x32xf32> to vector<32x32xbf16>
    %33 = arith.truncf %30 : vector<32x32xf32> to vector<32x32xbf16>
    %cst_13 = arith.constant dense<0.000000e+00> : vector<32x32xf32>
    %34 = tpu.matmul %32, %33, %cst_13 {dimension_numbers = #tpu.dot_dimension_numbers<[1], [1], [0], [0], [0, 0, 1, 0], [], []>} : vector<32x32xbf16>, vector<32x32xbf16>, vector<32x32xf32> -> vector<32x32xf32>
    %cst_14 = arith.constant dense<0xFF800000> : vector<32xf32>
    %35 = vector.multi_reduction <maximumf>, %34, %cst_14 [1] : vector<32x32xf32> to vector<32xf32>
    %36 = vector.shape_cast %35 : vector<32xf32> to vector<32x1xf32>
    %37 = vector.broadcast %36 : vector<32x1xf32> to vector<32x32xf32>
    %38 = arith.subf %34, %37 : vector<32x32xf32>
    %39 = math.exp %38 : vector<32x32xf32>
    %cst_15 = arith.constant dense<0.000000e+00> : vector<32xf32>
    %40 = vector.multi_reduction <add>, %39, %cst_15 [1] : vector<32x32xf32> to vector<32xf32>
    %41 = vector.shape_cast %40 : vector<32xf32> to vector<32x1xf32>
    %42 = tpu.reciprocal %41 {approx = true} : vector<32x1xf32> -> vector<32x1xf32>
    %43 = vector.broadcast %42 : vector<32x1xf32> to vector<32x32xf32>
    %44 = arith.mulf %39, %43 : vector<32x32xf32>
    %45 = arith.truncf %44 : vector<32x32xf32> to vector<32x32xbf16>
    %46 = arith.truncf %31 : vector<32x32xf32> to vector<32x32xbf16>
    %cst_16 = arith.constant dense<0.000000e+00> : vector<32x32xf32>
    %47 = tpu.matmul %45, %46, %cst_16 {dimension_numbers = #tpu.dot_dimension_numbers<[1], [0], [0], [1], [0, 0, 1, 1], [], []>} : vector<32x32xbf16>, vector<32x32xbf16>, vector<32x32xf32> -> vector<32x32xf32>
    %48 = vector.extract_strided_slice %28 {offsets = [0, 32], sizes = [32, 32], strides = [1, 1]} : vector<32x384xf32> to vector<32x32xf32>
    %49 = vector.extract_strided_slice %28 {offsets = [0, 160], sizes = [32, 32], strides = [1, 1]} : vector<32x384xf32> to vector<32x32xf32>
    %50 = vector.extract_strided_slice %28 {offsets = [0, 288], sizes = [32, 32], strides = [1, 1]} : vector<32x384xf32> to vector<32x32xf32>
    %51 = arith.truncf %48 : vector<32x32xf32> to vector<32x32xbf16>
    %52 = arith.truncf %49 : vector<32x32xf32> to vector<32x32xbf16>
    %cst_17 = arith.constant dense<0.000000e+00> : vector<32x32xf32>
    %53 = tpu.matmul %51, %52, %cst_17 {dimension_numbers = #tpu.dot_dimension_numbers<[1], [1], [0], [0], [0, 0, 1, 0], [], []>} : vector<32x32xbf16>, vector<32x32xbf16>, vector<32x32xf32> -> vector<32x32xf32>
    %cst_18 = arith.constant dense<0xFF800000> : vector<32xf32>
    %54 = vector.multi_reduction <maximumf>, %53, %cst_18 [1] : vector<32x32xf32> to vector<32xf32>
    %55 = vector.shape_cast %54 : vector<32xf32> to vector<32x1xf32>
    %56 = vector.broadcast %55 : vector<32x1xf32> to vector<32x32xf32>
    %57 = arith.subf %53, %56 : vector<32x32xf32>
    %58 = math.exp %57 : vector<32x32xf32>
    %cst_19 = arith.constant dense<0.000000e+00> : vector<32xf32>
    %59 = vector.multi_reduction <add>, %58, %cst_19 [1] : vector<32x32xf32> to vector<32xf32>
    %60 = vector.shape_cast %59 : vector<32xf32> to vector<32x1xf32>
    %61 = tpu.reciprocal %60 {approx = true} : vector<32x1xf32> -> vector<32x1xf32>
    %62 = vector.broadcast %61 : vector<32x1xf32> to vector<32x32xf32>
    %63 = arith.mulf %58, %62 : vector<32x32xf32>
    %64 = arith.truncf %63 : vector<32x32xf32> to vector<32x32xbf16>
    %65 = arith.truncf %50 : vector<32x32xf32> to vector<32x32xbf16>
    %cst_20 = arith.constant dense<0.000000e+00> : vector<32x32xf32>
    %66 = tpu.matmul %64, %65, %cst_20 {dimension_numbers = #tpu.dot_dimension_numbers<[1], [0], [0], [1], [0, 0, 1, 1], [], []>} : vector<32x32xbf16>, vector<32x32xbf16>, vector<32x32xf32> -> vector<32x32xf32>
    %67 = vector.extract_strided_slice %28 {offsets = [0, 64], sizes = [32, 32], strides = [1, 1]} : vector<32x384xf32> to vector<32x32xf32>
    %68 = vector.extract_strided_slice %28 {offsets = [0, 192], sizes = [32, 32], strides = [1, 1]} : vector<32x384xf32> to vector<32x32xf32>
    %69 = vector.extract_strided_slice %28 {offsets = [0, 320], sizes = [32, 32], strides = [1, 1]} : vector<32x384xf32> to vector<32x32xf32>
    %70 = arith.truncf %67 : vector<32x32xf32> to vector<32x32xbf16>
    %71 = arith.truncf %68 : vector<32x32xf32> to vector<32x32xbf16>
    %cst_21 = arith.constant dense<0.000000e+00> : vector<32x32xf32>
    %72 = tpu.matmul %70, %71, %cst_21 {dimension_numbers = #tpu.dot_dimension_numbers<[1], [1], [0], [0], [0, 0, 1, 0], [], []>} : vector<32x32xbf16>, vector<32x32xbf16>, vector<32x32xf32> -> vector<32x32xf32>
    %cst_22 = arith.constant dense<0xFF800000> : vector<32xf32>
    %73 = vector.multi_reduction <maximumf>, %72, %cst_22 [1] : vector<32x32xf32> to vector<32xf32>
    %74 = vector.shape_cast %73 : vector<32xf32> to vector<32x1xf32>
    %75 = vector.broadcast %74 : vector<32x1xf32> to vector<32x32xf32>
    %76 = arith.subf %72, %75 : vector<32x32xf32>
    %77 = math.exp %76 : vector<32x32xf32>
    %cst_23 = arith.constant dense<0.000000e+00> : vector<32xf32>
    %78 = vector.multi_reduction <add>, %77, %cst_23 [1] : vector<32x32xf32> to vector<32xf32>
    %79 = vector.shape_cast %78 : vector<32xf32> to vector<32x1xf32>
    %80 = tpu.reciprocal %79 {approx = true} : vector<32x1xf32> -> vector<32x1xf32>
    %81 = vector.broadcast %80 : vector<32x1xf32> to vector<32x32xf32>
    %82 = arith.mulf %77, %81 : vector<32x32xf32>
    %83 = arith.truncf %82 : vector<32x32xf32> to vector<32x32xbf16>
    %84 = arith.truncf %69 : vector<32x32xf32> to vector<32x32xbf16>
    %cst_24 = arith.constant dense<0.000000e+00> : vector<32x32xf32>
    %85 = tpu.matmul %83, %84, %cst_24 {dimension_numbers = #tpu.dot_dimension_numbers<[1], [0], [0], [1], [0, 0, 1, 1], [], []>} : vector<32x32xbf16>, vector<32x32xbf16>, vector<32x32xf32> -> vector<32x32xf32>
    %86 = vector.extract_strided_slice %28 {offsets = [0, 96], sizes = [32, 32], strides = [1, 1]} : vector<32x384xf32> to vector<32x32xf32>
    %87 = vector.extract_strided_slice %28 {offsets = [0, 224], sizes = [32, 32], strides = [1, 1]} : vector<32x384xf32> to vector<32x32xf32>
    %88 = vector.extract_strided_slice %28 {offsets = [0, 352], sizes = [32, 32], strides = [1, 1]} : vector<32x384xf32> to vector<32x32xf32>
    %89 = arith.truncf %86 : vector<32x32xf32> to vector<32x32xbf16>
    %90 = arith.truncf %87 : vector<32x32xf32> to vector<32x32xbf16>
    %cst_25 = arith.constant dense<0.000000e+00> : vector<32x32xf32>
    %91 = tpu.matmul %89, %90, %cst_25 {dimension_numbers = #tpu.dot_dimension_numbers<[1], [1], [0], [0], [0, 0, 1, 0], [], []>} : vector<32x32xbf16>, vector<32x32xbf16>, vector<32x32xf32> -> vector<32x32xf32>
    %cst_26 = arith.constant dense<0xFF800000> : vector<32xf32>
    %92 = vector.multi_reduction <maximumf>, %91, %cst_26 [1] : vector<32x32xf32> to vector<32xf32>
    %93 = vector.shape_cast %92 : vector<32xf32> to vector<32x1xf32>
    %94 = vector.broadcast %93 : vector<32x1xf32> to vector<32x32xf32>
    %95 = arith.subf %91, %94 : vector<32x32xf32>
    %96 = math.exp %95 : vector<32x32xf32>
    %cst_27 = arith.constant dense<0.000000e+00> : vector<32xf32>
    %97 = vector.multi_reduction <add>, %96, %cst_27 [1] : vector<32x32xf32> to vector<32xf32>
    %98 = vector.shape_cast %97 : vector<32xf32> to vector<32x1xf32>
    %99 = tpu.reciprocal %98 {approx = true} : vector<32x1xf32> -> vector<32x1xf32>
    %100 = vector.broadcast %99 : vector<32x1xf32> to vector<32x32xf32>
    %101 = arith.mulf %96, %100 : vector<32x32xf32>
    %102 = arith.truncf %101 : vector<32x32xf32> to vector<32x32xbf16>
    %103 = arith.truncf %88 : vector<32x32xf32> to vector<32x32xbf16>
    %cst_28 = arith.constant dense<0.000000e+00> : vector<32x32xf32>
    %104 = tpu.matmul %102, %103, %cst_28 {dimension_numbers = #tpu.dot_dimension_numbers<[1], [0], [0], [1], [0, 0, 1, 1], [], []>} : vector<32x32xbf16>, vector<32x32xbf16>, vector<32x32xf32> -> vector<32x32xf32>
    %105 = tpu.concatenate %47, %66, %85, %104 in 1 : vector<32x32xf32>, vector<32x32xf32>, vector<32x32xf32>, vector<32x32xf32> -> vector<32x128xf32>
    %106 = arith.truncf %105 : vector<32x128xf32> to vector<32x128xbf16>
    %c0_29 = arith.constant 0 : index
    %c0_30 = arith.constant 0 : index
    %107 = vector.load %arg3[%c0_29, %c0_30] : memref<128x128xbf16, #tpu.memory_space<vmem>>, vector<128x128xbf16>
    %cst_31 = arith.constant dense<0.000000e+00> : vector<32x128xf32>
    %108 = tpu.matmul %106, %107, %cst_31 {dimension_numbers = #tpu.dot_dimension_numbers<[1], [0], [0], [1], [0, 0, 1, 1], [], []>} : vector<32x128xbf16>, vector<128x128xbf16>, vector<32x128xf32> -> vector<32x128xf32>
    %c0_32 = arith.constant 0 : index
    %c0_33 = arith.constant 0 : index
    %109 = vector.load %arg4[%c0_32, %c0_33] : memref<1x128xf32, #tpu.memory_space<vmem>>, vector<1x128xf32>
    %110 = vector.broadcast %109 : vector<1x128xf32> to vector<32x128xf32>
    %111 = arith.addf %108, %110 : vector<32x128xf32>
    %112 = arith.addf %1, %111 : vector<32x128xf32>
    %c0_34 = arith.constant 0 : index
    %c0_35 = arith.constant 0 : index
    %113 = vector.load %arg7[%c0_34, %c0_35] : memref<1x128xf32, #tpu.memory_space<vmem>>, vector<1x128xf32>
    %c0_36 = arith.constant 0 : index
    %c0_37 = arith.constant 0 : index
    %114 = vector.load %arg8[%c0_36, %c0_37] : memref<1x128xf32, #tpu.memory_space<vmem>>, vector<1x128xf32>
    %cst_38 = arith.constant dense<0.000000e+00> : vector<32xf32>
    %115 = vector.multi_reduction <add>, %112, %cst_38 [1] : vector<32x128xf32> to vector<32xf32>
    %116 = vector.shape_cast %115 : vector<32xf32> to vector<32x1xf32>
    %cst_39 = arith.constant 1.280000e+02 : f32
    %117 = vector.broadcast %cst_39 : f32 to vector<32x1xf32>
    %118 = arith.divf %116, %117 : vector<32x1xf32>
    %119 = arith.mulf %112, %112 : vector<32x128xf32>
    %cst_40 = arith.constant dense<0.000000e+00> : vector<32xf32>
    %120 = vector.multi_reduction <add>, %119, %cst_40 [1] : vector<32x128xf32> to vector<32xf32>
    %121 = vector.shape_cast %120 : vector<32xf32> to vector<32x1xf32>
    %cst_41 = arith.constant 1.280000e+02 : f32
    %122 = vector.broadcast %cst_41 : f32 to vector<32x1xf32>
    %123 = arith.divf %121, %122 : vector<32x1xf32>
    %124 = arith.mulf %118, %118 : vector<32x1xf32>
    %125 = arith.subf %123, %124 : vector<32x1xf32>
    %126 = vector.broadcast %118 : vector<32x1xf32> to vector<32x128xf32>
    %127 = arith.subf %112, %126 : vector<32x128xf32>
    %cst_42 = arith.constant 9.99999997E-7 : f32
    %128 = vector.broadcast %cst_42 : f32 to vector<32x1xf32>
    %129 = arith.addf %125, %128 : vector<32x1xf32>
    %130 = math.rsqrt %129 : vector<32x1xf32>
    %131 = vector.broadcast %130 : vector<32x1xf32> to vector<32x128xf32>
    %132 = arith.mulf %127, %131 : vector<32x128xf32>
    %133 = vector.broadcast %113 : vector<1x128xf32> to vector<32x128xf32>
    %134 = arith.mulf %132, %133 : vector<32x128xf32>
    %135 = vector.broadcast %114 : vector<1x128xf32> to vector<32x128xf32>
    %136 = arith.addf %134, %135 : vector<32x128xf32>
    %137 = arith.truncf %136 : vector<32x128xf32> to vector<32x128xbf16>
    %c0_43 = arith.constant 0 : index
    %c0_44 = arith.constant 0 : index
    %138 = vector.load %arg9[%c0_43, %c0_44] : memref<128x512xbf16, #tpu.memory_space<vmem>>, vector<128x512xbf16>
    %cst_45 = arith.constant dense<0.000000e+00> : vector<32x512xf32>
    %139 = tpu.matmul %137, %138, %cst_45 {dimension_numbers = #tpu.dot_dimension_numbers<[1], [0], [0], [1], [0, 0, 1, 1], [], []>} : vector<32x128xbf16>, vector<128x512xbf16>, vector<32x512xf32> -> vector<32x512xf32>
    %c0_46 = arith.constant 0 : index
    %c0_47 = arith.constant 0 : index
    %140 = vector.load %arg10[%c0_46, %c0_47] : memref<1x512xf32, #tpu.memory_space<vmem>>, vector<1x512xf32>
    %141 = vector.broadcast %140 : vector<1x512xf32> to vector<32x512xf32>
    %142 = arith.addf %139, %141 : vector<32x512xf32>
    %143 = arith.mulf %142, %142 : vector<32x512xf32>
    %144 = arith.mulf %142, %143 : vector<32x512xf32>
    %cst_48 = arith.constant 4.471500e-02 : f32
    %145 = vector.broadcast %cst_48 : f32 to vector<32x512xf32>
    %146 = arith.mulf %145, %144 : vector<32x512xf32>
    %147 = arith.addf %142, %146 : vector<32x512xf32>
    %cst_49 = arith.constant 0.797884583 : f32
    %148 = vector.broadcast %cst_49 : f32 to vector<32x512xf32>
    %149 = arith.mulf %148, %147 : vector<32x512xf32>
    %150 = math.tanh %149 : vector<32x512xf32>
    %cst_50 = arith.constant 1.000000e+00 : f32
    %151 = vector.broadcast %cst_50 : f32 to vector<32x512xf32>
    %152 = arith.addf %151, %150 : vector<32x512xf32>
    %cst_51 = arith.constant 5.000000e-01 : f32
    %153 = vector.broadcast %cst_51 : f32 to vector<32x512xf32>
    %154 = arith.mulf %153, %152 : vector<32x512xf32>
    %155 = arith.mulf %142, %154 : vector<32x512xf32>
    %156 = arith.truncf %155 : vector<32x512xf32> to vector<32x512xbf16>
    %c0_52 = arith.constant 0 : index
    %c0_53 = arith.constant 0 : index
    %157 = vector.load %arg11[%c0_52, %c0_53] : memref<512x128xbf16, #tpu.memory_space<vmem>>, vector<512x128xbf16>
    %cst_54 = arith.constant dense<0.000000e+00> : vector<32x128xf32>
    %158 = tpu.matmul %156, %157, %cst_54 {dimension_numbers = #tpu.dot_dimension_numbers<[1], [0], [0], [1], [0, 0, 1, 1], [], []>} : vector<32x512xbf16>, vector<512x128xbf16>, vector<32x128xf32> -> vector<32x128xf32>
    %c0_55 = arith.constant 0 : index
    %c0_56 = arith.constant 0 : index
    %159 = vector.load %arg12[%c0_55, %c0_56] : memref<1x128xf32, #tpu.memory_space<vmem>>, vector<1x128xf32>
    %160 = vector.broadcast %159 : vector<1x128xf32> to vector<32x128xf32>
    %161 = arith.addf %158, %160 : vector<32x128xf32>
    %162 = arith.addf %112, %161 : vector<32x128xf32>
    %c0_57 = arith.constant 0 : index
    %c0_58 = arith.constant 0 : index
    %c0_59 = arith.constant 0 : index
    %163 = vector.load %arg13[%c0_57, %c0_58, %c0_59] : memref<1x32x128xf32, #tpu.memory_space<vmem>>, vector<1x32x128xf32>
    %164 = vector.shape_cast %163 : vector<1x32x128xf32> to vector<32x128xf32>
    %165 = vector.shape_cast %162 : vector<32x128xf32> to vector<1x32x128xf32>
    tpu.vector_store %arg13[%c0_57, %c0_58, %c0_59], %165 {strides = array<i32>} : memref<1x32x128xf32, #tpu.memory_space<vmem>>, vector<1x32x128xf32>,
    return
  }
  func.func @transform_0(%arg0: i32) -> (i32, i32, i32) {
    %c0_i32 = arith.constant 0 : i32
    %c0_i32_0 = arith.constant 0 : i32
    %c0_i32_1 = arith.constant 0 : i32
    return %arg0, %c0_i32, %c0_i32_0 : i32, i32, i32
  }
  func.func @transform_1(%arg0: i32) -> (i32, i32) {
    %c0_i32 = arith.constant 0 : i32
    %c0_i32_0 = arith.constant 0 : i32
    %c0_i32_1 = arith.constant 0 : i32
    return %c0_i32, %c0_i32_0 : i32, i32
  }
  func.func @transform_2(%arg0: i32) -> (i32, i32) {
    %c0_i32 = arith.constant 0 : i32
    %c0_i32_0 = arith.constant 0 : i32
    %c0_i32_1 = arith.constant 0 : i32
    return %c0_i32, %c0_i32_0 : i32, i32
  }
  func.func @transform_3(%arg0: i32) -> (i32, i32) {
    %c0_i32 = arith.constant 0 : i32
    %c0_i32_0 = arith.constant 0 : i32
    %c0_i32_1 = arith.constant 0 : i32
    return %c0_i32, %c0_i32_0 : i32, i32
  }
  func.func @transform_4(%arg0: i32) -> (i32, i32) {
    %c0_i32 = arith.constant 0 : i32
    %c0_i32_0 = arith.constant 0 : i32
    %c0_i32_1 = arith.constant 0 : i32
    return %c0_i32, %c0_i32_0 : i32, i32
  }
  func.func @transform_5(%arg0: i32) -> (i32, i32) {
    %c0_i32 = arith.constant 0 : i32
    %c0_i32_0 = arith.constant 0 : i32
    %c0_i32_1 = arith.constant 0 : i32
    return %c0_i32, %c0_i32_0 : i32, i32
  }
  func.func @transform_6(%arg0: i32) -> (i32, i32) {
    %c0_i32 = arith.constant 0 : i32
    %c0_i32_0 = arith.constant 0 : i32
    %c0_i32_1 = arith.constant 0 : i32
    return %c0_i32, %c0_i32_0 : i32, i32
  }
  func.func @transform_7(%arg0: i32) -> (i32, i32) {
    %c0_i32 = arith.constant 0 : i32
    %c0_i32_0 = arith.constant 0 : i32
    %c0_i32_1 = arith.constant 0 : i32
    return %c0_i32, %c0_i32_0 : i32, i32
  }
  func.func @transform_8(%arg0: i32) -> (i32, i32) {
    %c0_i32 = arith.constant 0 : i32
    %c0_i32_0 = arith.constant 0 : i32
    %c0_i32_1 = arith.constant 0 : i32
    return %c0_i32, %c0_i32_0 : i32, i32
  }
  func.func @transform_9(%arg0: i32) -> (i32, i32) {
    %c0_i32 = arith.constant 0 : i32
    %c0_i32_0 = arith.constant 0 : i32
    %c0_i32_1 = arith.constant 0 : i32
    return %c0_i32, %c0_i32_0 : i32, i32
  }
  func.func @transform_10(%arg0: i32) -> (i32, i32) {
    %c0_i32 = arith.constant 0 : i32
    %c0_i32_0 = arith.constant 0 : i32
    %c0_i32_1 = arith.constant 0 : i32
    return %c0_i32, %c0_i32_0 : i32, i32
  }
  func.func @transform_11(%arg0: i32) -> (i32, i32) {
    %c0_i32 = arith.constant 0 : i32
    %c0_i32_0 = arith.constant 0 : i32
    %c0_i32_1 = arith.constant 0 : i32
    return %c0_i32, %c0_i32_0 : i32, i32
  }
  func.func @transform_12(%arg0: i32) -> (i32, i32, i32) {
    %c0_i32 = arith.constant 0 : i32
    %c0_i32_0 = arith.constant 0 : i32
    %c0_i32_1 = arith.constant 0 : i32
    return %arg0, %c0_i32, %c0_i32_0 : i32, i32, i32
  }
}

</mosaic_0001>

<llo_original>
// kernel: tpu_custom_call.1
$region0: #{tpu_custom_call.1}
  #allocation0 [shape = 'u32[]', space=smem, size = 0x4, offset = 0x4, fixed_abs, tag = 'smem constant byte address 0x4 - core index']
  #allocation1 [shape = 'u32[72,128]{1,0:T(1,128)}', space=vmem, size = 0x9000, scoped, tag = 'internal scratch']
  %s0 = inlined_call_operand.hbm [shape: f32[2,32,128], index: 0, kind: input, shape index: {}]
  %s1 = inlined_call_operand.hbm [shape: bf16[128,384], index: 1, kind: input, shape index: {}]
  %s2 = inlined_call_operand.hbm [shape: bf16[128,128], index: 2, kind: input, shape index: {}]
  %s3 = inlined_call_operand.vmem [shape: f32[1,128], index: 3, kind: input, shape index: {}]
  %s4 = inlined_call_operand.vmem [shape: f32[1,128], index: 4, kind: input, shape index: {}]
  %s5 = inlined_call_operand.vmem [shape: f32[1,128], index: 5, kind: input, shape index: {}]
  %s6 = inlined_call_operand.hbm [shape: f32[1,128], index: 6, kind: input, shape index: {}]
  %s7 = inlined_call_operand.hbm [shape: f32[1,128], index: 7, kind: input, shape index: {}]
  %s8 = inlined_call_operand.hbm [shape: bf16[128,512], index: 8, kind: input, shape index: {}]
  %s9 = inlined_call_operand.vmem [shape: f32[1,512], index: 9, kind: input, shape index: {}]
  %s10 = inlined_call_operand.hbm [shape: bf16[512,128], index: 10, kind: input, shape index: {}]
  %s11 = inlined_call_operand.vmem [shape: f32[1,128], index: 11, kind: input, shape index: {}]
  %s12 = inlined_call_operand.hbm [shape: f32[2,32,128], index: 12, kind: output, shape index: {}]
  %s13 = sld [smem:[#allocation0]]
  $region109: #{tpu_custom_call.1} parent=0
    _
  %s15 = ssub.s32 1, %s13
  %s16 = scalar_select 0, %s15, %s13
  $region1: #{tpu_custom_call.1} parent=0
    #allocation2 [shape = 'u8[32768]{0}', space=vmem, size = 0x8000, scoped, tag = 'input window, operand 0']
    #allocation3 [shape = 's32[2]{0}', space=sflag, size = 0x8, scoped, tag = 'scoped memory for tpu_custom_call.1']
    #allocation4 [shape = 's32[2]{0}', space=sflag, size = 0x8, scoped, tag = 'scoped memory for tpu_custom_call.1']
    #allocation5 [shape = 'u8[98304]{0}', space=vmem, size = 0x18000, scoped, tag = 'input window, operand 1, single buffered']
    #allocation6 [shape = 's32[1]{0}', space=sflag, size = 0x4, scoped, tag = 'scoped memory for tpu_custom_call.1']
    #allocation7 [shape = 'u8[32768]{0}', space=vmem, size = 0x8000, scoped, tag = 'input window, operand 2, single buffered']
    #allocation8 [shape = 'u8[512]{0}', space=vmem, size = 0x400, scoped, tag = 'input window, operand 6, single buffered']
    #allocation9 [shape = 's32[1]{0}', space=sflag, size = 0x4, scoped, tag = 'scoped memory for tpu_custom_call.1']
    #allocation10 [shape = 'u8[512]{0}', space=vmem, size = 0x400, scoped, tag = 'input window, operand 7, single buffered']
    #allocation11 [shape = 'u8[131072]{0}', space=vmem, size = 0x20000, scoped, tag = 'input window, operand 8, single buffered']
    #allocation12 [shape = 's32[1]{0}', space=sflag, size = 0x4, scoped, tag = 'scoped memory for tpu_custom_call.1']
    #allocation13 [shape = 'u8[131072]{0}', space=vmem, size = 0x20000, scoped, tag = 'input window, operand 10, single buffered']
    #allocation14 [shape = 'u8[32768]{0}', space=vmem, size = 0x8000, scoped, tag = 'output window, operand 0']
    %17 = vsyncpa [#allocation3], 0
    %s18 = scalar_lea.sflag [#allocation3], 1
    %19 = vsyncpa %s18, 0
    %20 = vsyncpa [#allocation6], 0
    %21 = vsyncpa [#allocation9], 0
    %22 = vsyncpa [#allocation12], 0
    %23 = vsyncpa [#allocation4], 0
    %s24 = scalar_lea.sflag [#allocation4], 1
    %25 = vsyncpa %s24, 0
    loop: start=0, step=1, limit=4
    $region2: #{tpu_custom_call.1} parent=1 // loop_pre_header
      _
    $region3: #{tpu_custom_call.1} parent=1 // loop_header
      %s27 = sphi 0, %s31
      %p28 = scmp.ge.s32.totalorder %s27, 4
      %s37 = sphi 0, %s39
      %s40 = sphi 0, %s37
      %s41 = sphi 0, %s40
      %s57 = sphi 0, %s41
      %s61 = sphi 0, %s61
      %s63 = sphi 0, %s61
      %s64 = sphi 0, %s63
      %s78 = sphi 0, %s64
      %s82 = sphi 0, %s82
      %s84 = sphi 0, %s82
      %s85 = sphi 0, %s84
      %s99 = sphi 0, %s85
      %s103 = sphi 0, %s103
      %s105 = sphi 0, %s103
      %s106 = sphi 0, %s105
      %s120 = sphi 0, %s106
      %s124 = sphi 0, %s124
      %s126 = sphi 0, %s124
      %s127 = sphi 0, %s126
      %s141 = sphi 0, %s127
      %s145 = sphi 0, %s145
      %s147 = sphi 0, %s145
      %s148 = sphi 0, %s147
      %s162 = sphi 0, %s148
      %s166 = sphi 0, %s166
      %s168 = sphi 0, %s166
      %s169 = sphi 0, %s168
      %s183 = sphi 0, %s169
      %s187 = sphi 0, %s187
      %s189 = sphi 0, %s187
      %s190 = sphi 0, %s189
      %s204 = sphi 0, %s190
      %s208 = sphi 0, %s208
      %s210 = sphi 0, %s208
      %s211 = sphi 0, %s210
      %s225 = sphi 0, %s211
      %s229 = sphi 0, %s229
      %s231 = sphi 0, %s229
      %s232 = sphi 0, %s231
      %s246 = sphi 0, %s232
      %s250 = sphi 0, %s250
      %s252 = sphi 0, %s250
      %s253 = sphi 0, %s252
      %s267 = sphi 0, %s253
      %s271 = sphi 0, %s271
      %s273 = sphi 0, %s271
      %s274 = sphi 0, %s273
      %s288 = sphi 0, %s274
      %s294 = sphi 0, %s296
      %s297 = sphi 0, %s294
      %s298 = sphi 0, %s297
      %s314 = sphi 0, %s298
    $region4: #{tpu_custom_call.1} parent=1 // loop_header_branch
      %30 = sbr.rel (%p28) target = $region8
    $region5: #{tpu_custom_call.1} parent=1 // loop_body
      %s32 = ssub.s32 %s27, 1
      %s33 = ssub.s32 %s27, 2
      %s34 = sadd.s32 %s27, 1
      %s35 = ssub.s32 %s27, %s34
      %p36 = scmp.eq.s32.totalorder %s35, 0
      %s38 = sadd.s32 %s37, 1
      %s39 = scalar_select %p36, %s37, %s38
      %p42 = pneg %p36
      %p43 = scmp.eq.s32.totalorder %s27, 1
      %p44 = por %p42, %p43
      %p45 = scmp.ne.s32.totalorder %s37, %s40
      %p46 = scmp.eq.s32.totalorder %s27, 0
      %p47 = por %p45, %p46
      %p48 = scmp.ne.s32.totalorder %s37, %s40
      %p49 = scmp.eq.s32.totalorder %s32, 1
      %p50 = por %p48, %p49
      %p51 = scmp.ne.s32.totalorder %s40, %s41
      %p52 = scmp.eq.s32.totalorder %s32, 0
      %p53 = por %p51, %p52
      %p54 = scmp.ne.s32.totalorder %s40, %s41
      %p55 = scmp.eq.s32.totalorder %s33, 1
      %p56 = por %p54, %p55
      %p58 = scmp.ne.s32.totalorder %s41, %s57
      %p59 = scmp.eq.s32.totalorder %s33, 0
      %p60 = por %p58, %p59
      %s62 = sadd.s32 %s61, 1
      %p65 = scmp.eq.s32.totalorder %s27, 1
      %p66 = scmp.ne.s32.totalorder %s61, %s63
      %p67 = scmp.eq.s32.totalorder %s27, 0
      %p68 = por %p66, %p67
      %p69 = scmp.ne.s32.totalorder %s61, %s63
      %p70 = scmp.eq.s32.totalorder %s32, 1
      %p71 = por %p69, %p70
      %p72 = scmp.ne.s32.totalorder %s63, %s64
      %p73 = scmp.eq.s32.totalorder %s32, 0
      %p74 = por %p72, %p73
      %p75 = scmp.ne.s32.totalorder %s63, %s64
      %p76 = scmp.eq.s32.totalorder %s33, 1
      %p77 = por %p75, %p76
      %p79 = scmp.ne.s32.totalorder %s64, %s78
      %p80 = scmp.eq.s32.totalorder %s33, 0
      %p81 = por %p79, %p80
      %s83 = sadd.s32 %s82, 1
      %p86 = scmp.eq.s32.totalorder %s27, 1
      %p87 = scmp.ne.s32.totalorder %s82, %s84
      %p88 = scmp.eq.s32.totalorder %s27, 0
      %p89 = por %p87, %p88
      %p90 = scmp.ne.s32.totalorder %s82, %s84
      %p91 = scmp.eq.s32.totalorder %s32, 1
      %p92 = por %p90, %p91
      %p93 = scmp.ne.s32.totalorder %s84, %s85
      %p94 = scmp.eq.s32.totalorder %s32, 0
      %p95 = por %p93, %p94
      %p96 = scmp.ne.s32.totalorder %s84, %s85
      %p97 = scmp.eq.s32.totalorder %s33, 1
      %p98 = por %p96, %p97
      %p100 = scmp.ne.s32.totalorder %s85, %s99
      %p101 = scmp.eq.s32.totalorder %s33, 0
      %p102 = por %p100, %p101
      %s104 = sadd.s32 %s103, 1
      %p107 = scmp.eq.s32.totalorder %s27, 1
      %p108 = scmp.ne.s32.totalorder %s103, %s105
      %p109 = scmp.eq.s32.totalorder %s27, 0
      %p110 = por %p108, %p109
      %p111 = scmp.ne.s32.totalorder %s103, %s105
      %p112 = scmp.eq.s32.totalorder %s32, 1
      %p113 = por %p111, %p112
      %p114 = scmp.ne.s32.totalorder %s105, %s106
      %p115 = scmp.eq.s32.totalorder %s32, 0
      %p116 = por %p114, %p115
      %p117 = scmp.ne.s32.totalorder %s105, %s106
      %p118 = scmp.eq.s32.totalorder %s33, 1
      %p119 = por %p117, %p118
      %p121 = scmp.ne.s32.totalorder %s106, %s120
      %p122 = scmp.eq.s32.totalorder %s33, 0
      %p123 = por %p121, %p122
      %s125 = sadd.s32 %s124, 1
      %p128 = scmp.eq.s32.totalorder %s27, 1
      %p129 = scmp.ne.s32.totalorder %s124, %s126
      %p130 = scmp.eq.s32.totalorder %s27, 0
      %p131 = por %p129, %p130
      %p132 = scmp.ne.s32.totalorder %s124, %s126
      %p133 = scmp.eq.s32.totalorder %s32, 1
      %p134 = por %p132, %p133
      %p135 = scmp.ne.s32.totalorder %s126, %s127
      %p136 = scmp.eq.s32.totalorder %s32, 0
      %p137 = por %p135, %p136
      %p138 = scmp.ne.s32.totalorder %s126, %s127
      %p139 = scmp.eq.s32.totalorder %s33, 1
      %p140 = por %p138, %p139
      %p142 = scmp.ne.s32.totalorder %s127, %s141
      %p143 = scmp.eq.s32.totalorder %s33, 0
      %p144 = por %p142, %p143
      %s146 = sadd.s32 %s145, 1
      %p149 = scmp.eq.s32.totalorder %s27, 1
      %p150 = scmp.ne.s32.totalorder %s145, %s147
      %p151 = scmp.eq.s32.totalorder %s27, 0
      %p152 = por %p150, %p151
      %p153 = scmp.ne.s32.totalorder %s145, %s147
      %p154 = scmp.eq.s32.totalorder %s32, 1
      %p155 = por %p153, %p154
      %p156 = scmp.ne.s32.totalorder %s147, %s148
      %p157 = scmp.eq.s32.totalorder %s32, 0
      %p158 = por %p156, %p157
      %p159 = scmp.ne.s32.totalorder %s147, %s148
      %p160 = scmp.eq.s32.totalorder %s33, 1
      %p161 = por %p159, %p160
      %p163 = scmp.ne.s32.totalorder %s148, %s162
      %p164 = scmp.eq.s32.totalorder %s33, 0
      %p165 = por %p163, %p164
      %s167 = sadd.s32 %s166, 1
      %p170 = scmp.eq.s32.totalorder %s27, 1
      %p171 = scmp.ne.s32.totalorder %s166, %s168
      %p172 = scmp.eq.s32.totalorder %s27, 0
      %p173 = por %p171, %p172
      %p174 = scmp.ne.s32.totalorder %s166, %s168
      %p175 = scmp.eq.s32.totalorder %s32, 1
      %p176 = por %p174, %p175
      %p177 = scmp.ne.s32.totalorder %s168, %s169
      %p178 = scmp.eq.s32.totalorder %s32, 0
      %p179 = por %p177, %p178
      %p180 = scmp.ne.s32.totalorder %s168, %s169
      %p181 = scmp.eq.s32.totalorder %s33, 1
      %p182 = por %p180, %p181
      %p184 = scmp.ne.s32.totalorder %s169, %s183
      %p185 = scmp.eq.s32.totalorder %s33, 0
      %p186 = por %p184, %p185
      %s188 = sadd.s32 %s187, 1
      %p191 = scmp.eq.s32.totalorder %s27, 1
      %p192 = scmp.ne.s32.totalorder %s187, %s189
      %p193 = scmp.eq.s32.totalorder %s27, 0
      %p194 = por %p192, %p193
      %p195 = scmp.ne.s32.totalorder %s187, %s189
      %p196 = scmp.eq.s32.totalorder %s32, 1
      %p197 = por %p195, %p196
      %p198 = scmp.ne.s32.totalorder %s189, %s190
      %p199 = scmp.eq.s32.totalorder %s32, 0
      %p200 = por %p198, %p199
      %p201 = scmp.ne.s32.totalorder %s189, %s190
      %p202 = scmp.eq.s32.totalorder %s33, 1
      %p203 = por %p201, %p202
      %p205 = scmp.ne.s32.totalorder %s190, %s204
      %p206 = scmp.eq.s32.totalorder %s33, 0
      %p207 = por %p205, %p206
      %s209 = sadd.s32 %s208, 1
      %p212 = scmp.eq.s32.totalorder %s27, 1
      %p213 = scmp.ne.s32.totalorder %s208, %s210
      %p214 = scmp.eq.s32.totalorder %s27, 0
      %p215 = por %p213, %p214
      %p216 = scmp.ne.s32.totalorder %s208, %s210
      %p217 = scmp.eq.s32.totalorder %s32, 1
      %p218 = por %p216, %p217
      %p219 = scmp.ne.s32.totalorder %s210, %s211
      %p220 = scmp.eq.s32.totalorder %s32, 0
      %p221 = por %p219, %p220
      %p222 = scmp.ne.s32.totalorder %s210, %s211
      %p223 = scmp.eq.s32.totalorder %s33, 1
      %p224 = por %p222, %p223
      %p226 = scmp.ne.s32.totalorder %s211, %s225
      %p227 = scmp.eq.s32.totalorder %s33, 0
      %p228 = por %p226, %p227
      %s230 = sadd.s32 %s229, 1
      %p233 = scmp.eq.s32.totalorder %s27, 1
      %p234 = scmp.ne.s32.totalorder %s229, %s231
      %p235 = scmp.eq.s32.totalorder %s27, 0
      %p236 = por %p234, %p235
      %p237 = scmp.ne.s32.totalorder %s229, %s231
      %p238 = scmp.eq.s32.totalorder %s32, 1
      %p239 = por %p237, %p238
      %p240 = scmp.ne.s32.totalorder %s231, %s232
      %p241 = scmp.eq.s32.totalorder %s32, 0
      %p242 = por %p240, %p241
      %p243 = scmp.ne.s32.totalorder %s231, %s232
      %p244 = scmp.eq.s32.totalorder %s33, 1
      %p245 = por %p243, %p244
      %p247 = scmp.ne.s32.totalorder %s232, %s246
      %p248 = scmp.eq.s32.totalorder %s33, 0
      %p249 = por %p247, %p248
      %s251 = sadd.s32 %s250, 1
      %p254 = scmp.eq.s32.totalorder %s27, 1
      %p255 = scmp.ne.s32.totalorder %s250, %s252
      %p256 = scmp.eq.s32.totalorder %s27, 0
      %p257 = por %p255, %p256
      %p258 = scmp.ne.s32.totalorder %s250, %s252
      %p259 = scmp.eq.s32.totalorder %s32, 1
      %p260 = por %p258, %p259
      %p261 = scmp.ne.s32.totalorder %s252, %s253
      %p262 = scmp.eq.s32.totalorder %s32, 0
      %p263 = por %p261, %p262
      %p264 = scmp.ne.s32.totalorder %s252, %s253
      %p265 = scmp.eq.s32.totalorder %s33, 1
      %p266 = por %p264, %p265
      %p268 = scmp.ne.s32.totalorder %s253, %s267
      %p269 = scmp.eq.s32.totalorder %s33, 0
      %p270 = por %p268, %p269
      %s272 = sadd.s32 %s271, 1
      %p275 = scmp.eq.s32.totalorder %s27, 1
      %p276 = scmp.ne.s32.totalorder %s271, %s273
      %p277 = scmp.eq.s32.totalorder %s27, 0
      %p278 = por %p276, %p277
      %p279 = scmp.ne.s32.totalorder %s271, %s273
      %p280 = scmp.eq.s32.totalorder %s32, 1
      %p281 = por %p279, %p280
      %p282 = scmp.ne.s32.totalorder %s273, %s274
      %p283 = scmp.eq.s32.totalorder %s32, 0
      %p284 = por %p282, %p283
      %p285 = scmp.ne.s32.totalorder %s273, %s274
      %p286 = scmp.eq.s32.totalorder %s33, 1
      %p287 = por %p285, %p286
      %p289 = scmp.ne.s32.totalorder %s274, %s288
      %p290 = scmp.eq.s32.totalorder %s33, 0
      %p291 = por %p289, %p290
      %s292 = ssub.s32 %s27, %s34
      %p293 = scmp.eq.s32.totalorder %s292, 0
      %s295 = sadd.s32 %s294, 1
      %s296 = scalar_select %p293, %s294, %s295
      %p299 = pneg %p293
      %p300 = scmp.eq.s32.totalorder %s27, 1
      %p301 = por %p299, %p300
      %p302 = scmp.ne.s32.totalorder %s294, %s297
      %p303 = scmp.eq.s32.totalorder %s27, 0
      %p304 = por %p302, %p303
      %p305 = scmp.ne.s32.totalorder %s294, %s297
      %p306 = scmp.eq.s32.totalorder %s32, 1
      %p307 = por %p305, %p306
      %p308 = scmp.ne.s32.totalorder %s297, %s298
      %p309 = scmp.eq.s32.totalorder %s32, 0
      %p310 = por %p308, %p309
      %p311 = scmp.ne.s32.totalorder %s297, %s298
      %p312 = scmp.eq.s32.totalorder %s33, 1
      %p313 = por %p311, %p312
      %p315 = scmp.ne.s32.totalorder %s298, %s314
      %p316 = scmp.eq.s32.totalorder %s33, 0
      %p317 = por %p315, %p316
      %p318 = scmp.le.s32.totalorder 1, %s27
      %p319 = scmp.lt.s32.totalorder %s27, 3
      %p320 = pnand %p318, %p319
      %p321 = pneg %p320
      // Predicated region
      $region9: #{tpu_custom_call.1} parent=5 // pred_check
        _
      $region10: #{tpu_custom_call.1} parent=5 // pred_check_branch
        %323 = sbr.rel (%p320) target = $region12
      $region11: #{tpu_custom_call.1} parent=5 // pred_region
        %s324 = ssub.s32 %s27, 1
        // Predicated region
        $region13: #{tpu_custom_call.1} parent=11 // pred_check
          %p325 = pneg %p74
        $region14: #{tpu_custom_call.1} parent=11 // pred_check_branch
          %327 = sbr.rel (%p325) target = $region16
        $region15: #{tpu_custom_call.1} parent=11 // pred_region
          %329 = vsyncadd [#allocation6], 0
          %s330 = sshll.u32 %s1, 4
          %s331 = int_to_ptr.hbm [resolvable:$true] %s330
          %s332 = sshll.u32 [#allocation5], 4
          %s333 = int_to_ptr.vmem [resolvable:$true] %s332
          %338 = dma.hbm_to_vmem [thread:$0]  %s331, 3072, %s333, [#allocation6], 192, 192, 12
        $region16: #{tpu_custom_call.1} parent=11 // pred_fallthru
          _
        // Predicated region
        $region17: #{tpu_custom_call.1} parent=11 // pred_check
          %p339 = pneg %p95
        $region18: #{tpu_custom_call.1} parent=11 // pred_check_branch
          %341 = sbr.rel (%p339) target = $region20
        $region19: #{tpu_custom_call.1} parent=11 // pred_region
          %343 = vsyncadd [#allocation6], 0
          %s344 = sshll.u32 %s2, 4
          %s345 = int_to_ptr.hbm [resolvable:$true] %s344
          %s346 = sshll.u32 [#allocation7], 4
          %s347 = int_to_ptr.vmem [resolvable:$true] %s346
          %352 = dma.hbm_to_vmem [thread:$0]  %s345, 1024, %s347, [#allocation6], 64, 64, 4
        $region20: #{tpu_custom_call.1} parent=11 // pred_fallthru
          _
        // Predicated region
        $region21: #{tpu_custom_call.1} parent=11 // pred_check
          %p353 = pneg %p116
        $region22: #{tpu_custom_call.1} parent=11 // pred_check_branch
          %355 = sbr.rel (%p353) target = $region24
        $region23: #{tpu_custom_call.1} parent=11 // pred_region
          _
        $region24: #{tpu_custom_call.1} parent=11 // pred_fallthru
          _
        // Predicated region
        $region25: #{tpu_custom_call.1} parent=11 // pred_check
          %p356 = pneg %p137
        $region26: #{tpu_custom_call.1} parent=11 // pred_check_branch
          %358 = sbr.rel (%p356) target = $region28
        $region27: #{tpu_custom_call.1} parent=11 // pred_region
          _
        $region28: #{tpu_custom_call.1} parent=11 // pred_fallthru
          _
        // Predicated region
        $region29: #{tpu_custom_call.1} parent=11 // pred_check
          %p359 = pneg %p158
        $region30: #{tpu_custom_call.1} parent=11 // pred_check_branch
          %361 = sbr.rel (%p359) target = $region32
        $region31: #{tpu_custom_call.1} parent=11 // pred_region
          _
        $region32: #{tpu_custom_call.1} parent=11 // pred_fallthru
          _
        // Predicated region
        $region33: #{tpu_custom_call.1} parent=11 // pred_check
          %p362 = pneg %p179
        $region34: #{tpu_custom_call.1} parent=11 // pred_check_branch
          %364 = sbr.rel (%p362) target = $region36
        $region35: #{tpu_custom_call.1} parent=11 // pred_region
          %366 = vsyncadd [#allocation9], 0
          %s368 = sshll.u32 %s6, 4
          %s369 = int_to_ptr.hbm [resolvable:$true] %s368
          %s370 = sshll.u32 [#allocation8], 4
          %s371 = int_to_ptr.vmem [resolvable:$true] %s370
          %373 = dma.hbm_to_vmem [thread:$0]  %s369, 16, %s371, [#allocation9]
        $region36: #{tpu_custom_call.1} parent=11 // pred_fallthru
          _
        // Predicated region
        $region37: #{tpu_custom_call.1} parent=11 // pred_check
          %p374 = pneg %p200
        $region38: #{tpu_custom_call.1} parent=11 // pred_check_branch
          %376 = sbr.rel (%p374) target = $region40
        $region39: #{tpu_custom_call.1} parent=11 // pred_region
          %378 = vsyncadd [#allocation9], 0
          %s380 = sshll.u32 %s7, 4
          %s381 = int_to_ptr.hbm [resolvable:$true] %s380
          %s382 = sshll.u32 [#allocation10], 4
          %s383 = int_to_ptr.vmem [resolvable:$true] %s382
          %385 = dma.hbm_to_vmem [thread:$0]  %s381, 16, %s383, [#allocation9]
        $region40: #{tpu_custom_call.1} parent=11 // pred_fallthru
          _
        // Predicated region
        $region41: #{tpu_custom_call.1} parent=11 // pred_check
          %p386 = pneg %p221
        $region42: #{tpu_custom_call.1} parent=11 // pred_check_branch
          %388 = sbr.rel (%p386) target = $region44
        $region43: #{tpu_custom_call.1} parent=11 // pred_region
          %390 = vsyncadd [#allocation12], 0
          %s391 = sshll.u32 %s8, 4
          %s392 = int_to_ptr.hbm [resolvable:$true] %s391
          %s393 = sshll.u32 [#allocation11], 4
          %s394 = int_to_ptr.vmem [resolvable:$true] %s393
          %399 = dma.hbm_to_vmem [thread:$0]  %s392, 4096, %s394, [#allocation12], 256, 256, 16
        $region44: #{tpu_custom_call.1} parent=11 // pred_fallthru
          _
        // Predicated region
        $region45: #{tpu_custom_call.1} parent=11 // pred_check
          %p400 = pneg %p242
        $region46: #{tpu_custom_call.1} parent=11 // pred_check_branch
          %402 = sbr.rel (%p400) target = $region48
        $region47: #{tpu_custom_call.1} parent=11 // pred_region
          _
        $region48: #{tpu_custom_call.1} parent=11 // pred_fallthru
          _
        // Predicated region
        $region49: #{tpu_custom_call.1} parent=11 // pred_check
          %p403 = pneg %p263
        $region50: #{tpu_custom_call.1} parent=11 // pred_check_branch
          %405 = sbr.rel (%p403) target = $region52
        $region51: #{tpu_custom_call.1} parent=11 // pred_region
          %407 = vsyncadd [#allocation12], 0
          %s408 = sshll.u32 %s10, 4
          %s409 = int_to_ptr.hbm [resolvable:$true] %s408
          %s410 = sshll.u32 [#allocation13], 4
          %s411 = int_to_ptr.vmem [resolvable:$true] %s410
          %416 = dma.hbm_to_vmem [thread:$0]  %s409, 4096, %s411, [#allocation12], 64, 64, 4
        $region52: #{tpu_custom_call.1} parent=11 // pred_fallthru
          _
        // Predicated region
        $region53: #{tpu_custom_call.1} parent=11 // pred_check
          %p417 = pneg %p284
        $region54: #{tpu_custom_call.1} parent=11 // pred_check_branch
          %419 = sbr.rel (%p417) target = $region56
        $region55: #{tpu_custom_call.1} parent=11 // pred_region
          _
        $region56: #{tpu_custom_call.1} parent=11 // pred_fallthru
          _
      $region12: #{tpu_custom_call.1} parent=5 // pred_fallthru
        _
      %p420 = scmp.lt.s32.totalorder %s27, 2
      // Predicated region
      $region57: #{tpu_custom_call.1} parent=5 // pred_check
        %p421 = pneg %p420
      $region58: #{tpu_custom_call.1} parent=5 // pred_check_branch
        %423 = sbr.rel (%p421) target = $region60
      $region59: #{tpu_custom_call.1} parent=5 // pred_region
        // Predicated region
        $region61: #{tpu_custom_call.1} parent=59 // pred_check
          %p424 = pneg %p47
        $region62: #{tpu_custom_call.1} parent=59 // pred_check_branch
          %426 = sbr.rel (%p424) target = $region64
        $region63: #{tpu_custom_call.1} parent=59 // pred_region
          %s427 = sand.u32 %s37, 1
          %s428 = scalar_lea.sflag [#allocation3], %s427
          %s429 = sand.u32 %s37, 1
          %s430 = smul.addr %s429, 32
          %s431 = scalar_lea.vmem [#allocation2], %s430
          %433 = vsyncadd %s428, 0
          %s434 = smul.addr %s27, 4
          %s435 = smul.addr %s434, 8
          %s436 = scalar_lea.hbm %s0, %s435
          %s437 = sshll.u32 %s436, 4
          %s438 = int_to_ptr.hbm [resolvable:$true] %s437
          %s439 = sshll.u32 %s431, 4
          %s440 = int_to_ptr.vmem [resolvable:$true] %s439
          %445 = dma.hbm_to_vmem [thread:$0]  %s438, 512, %s440, %s428, 128, 128, 8
        $region64: #{tpu_custom_call.1} parent=59 // pred_fallthru
          _
      $region60: #{tpu_custom_call.1} parent=5 // pred_fallthru
        _
      %p446 = scmp.le.s32.totalorder 1, %s27
      %p447 = scmp.lt.s32.totalorder %s27, 3
      %p448 = pnand %p446, %p447
      %p449 = pneg %p448
      // Predicated region
      $region65: #{tpu_custom_call.1} parent=5 // pred_check
        _
      $region66: #{tpu_custom_call.1} parent=5 // pred_check_branch
        %451 = sbr.rel (%p448) target = $region68
      $region67: #{tpu_custom_call.1} parent=5 // pred_region
        %s452 = ssub.s32 %s27, 1
        %s453 = sand.u32 %s40, 1
        %s454 = scalar_lea.sflag [#allocation3], %s453
        %s455 = sand.u32 %s40, 1
        %s456 = smul.addr %s455, 32
        %s457 = scalar_lea.vmem [#allocation2], %s456
        // Predicated region
        $region69: #{tpu_custom_call.1} parent=67 // pred_check
          %p458 = pneg %p53
        $region70: #{tpu_custom_call.1} parent=67 // pred_check_branch
          %460 = sbr.rel (%p458) target = $region72
        $region71: #{tpu_custom_call.1} parent=67 // pred_region
          %462 = dma.done %s454, 512
        $region72: #{tpu_custom_call.1} parent=67 // pred_fallthru
          _
        // Predicated region
        $region73: #{tpu_custom_call.1} parent=67 // pred_check
          %p463 = pneg %p74
        $region74: #{tpu_custom_call.1} parent=67 // pred_check_branch
          %465 = sbr.rel (%p463) target = $region76
        $region75: #{tpu_custom_call.1} parent=67 // pred_region
          %467 = dma.done [#allocation6], 3072
        $region76: #{tpu_custom_call.1} parent=67 // pred_fallthru
          _
        // Predicated region
        $region77: #{tpu_custom_call.1} parent=67 // pred_check
          %p468 = pneg %p95
        $region78: #{tpu_custom_call.1} parent=67 // pred_check_branch
          %470 = sbr.rel (%p468) target = $region80
        $region79: #{tpu_custom_call.1} parent=67 // pred_region
          %472 = dma.done [#allocation6], 1024
        $region80: #{tpu_custom_call.1} parent=67 // pred_fallthru
          _
        // Predicated region
        $region81: #{tpu_custom_call.1} parent=67 // pred_check
          %p473 = pneg %p179
        $region82: #{tpu_custom_call.1} parent=67 // pred_check_branch
          %475 = sbr.rel (%p473) target = $region84
        $region83: #{tpu_custom_call.1} parent=67 // pred_region
          %477 = dma.done [#allocation9], 16
        $region84: #{tpu_custom_call.1} parent=67 // pred_fallthru
          _
        // Predicated region
        $region85: #{tpu_custom_call.1} parent=67 // pred_check
          %p478 = pneg %p200
        $region86: #{tpu_custom_call.1} parent=67 // pred_check_branch
          %480 = sbr.rel (%p478) target = $region88
        $region87: #{tpu_custom_call.1} parent=67 // pred_region
          %482 = dma.done [#allocation9], 16
        $region88: #{tpu_custom_call.1} parent=67 // pred_fallthru
          _
        // Predicated region
        $region89: #{tpu_custom_call.1} parent=67 // pred_check
          %p483 = pneg %p221
        $region90: #{tpu_custom_call.1} parent=67 // pred_check_branch
          %485 = sbr.rel (%p483) target = $region92
        $region91: #{tpu_custom_call.1} parent=67 // pred_region
          %487 = dma.done [#allocation12], 4096
        $region92: #{tpu_custom_call.1} parent=67 // pred_fallthru
          _
        // Predicated region
        $region93: #{tpu_custom_call.1} parent=67 // pred_check
          %p488 = pneg %p263
        $region94: #{tpu_custom_call.1} parent=67 // pred_check_branch
          %490 = sbr.rel (%p488) target = $region96
        $region95: #{tpu_custom_call.1} parent=67 // pred_region
          %492 = dma.done [#allocation12], 4096
        $region96: #{tpu_custom_call.1} parent=67 // pred_fallthru
          _
        %s493 = sand.u32 %s40, 1
        %s494 = scalar_lea.sflag [#allocation3], %s493
        %s495 = sand.u32 %s40, 1
        %s496 = smul.addr %s495, 32
        %s497 = scalar_lea.vmem [#allocation2], %s496
        %p498 = pneg %p53
        %p499 = pneg %p50
        %p500 = pneg %p74
        %p501 = pneg %p71
        %p502 = pneg %p95
        %p503 = pneg %p92
        %p504 = pneg %p116
        %p505 = pneg %p113
        %p506 = pneg %p137
        %p507 = pneg %p134
        %p508 = pneg %p158
        %p509 = pneg %p155
        %p510 = pneg %p179
        %p511 = pneg %p176
        %p512 = pneg %p200
        %p513 = pneg %p197
        %p514 = pneg %p221
        %p515 = pneg %p218
        %p516 = pneg %p242
        %p517 = pneg %p239
        %p518 = pneg %p263
        %p519 = pneg %p260
        %p520 = pneg %p284
        %p521 = pneg %p281
        %p522 = pneg %p310
        %p523 = pneg %p307
        %s524 = sand.u32 %s297, 1
        %s525 = scalar_lea.sflag [#allocation4], %s524
        %s526 = sand.u32 %s297, 1
        %s527 = smul.addr %s526, 32
        %s528 = scalar_lea.vmem [#allocation14], %s527
        %v530 = vld [vmem:[%s457] sm:$0xff]
        %v531 = vld [vmem:[%s457 + $0x8] sm:$0xff]
        %v532 = vld [vmem:[%s457 + $0x10] sm:$0xff]
        %v533 = vld [vmem:[%s457 + $0x18] sm:$0xff]
        %v534 = vld [vmem:[%s4] sm:$0x1]
        %v535 = vld [vmem:[%s5] sm:$0x1]
        %536 = vadd.xlane.f32.xlu0 %v530
        %v537 = vpop.xlane.xlu0 %536
        %538 = vadd.xlane.f32.xlu0 %v531
        %v539 = vpop.xlane.xlu0 %538
        %540 = vadd.xlane.f32.xlu0 %v532
        %v541 = vpop.xlane.xlu0 %540
        %542 = vadd.xlane.f32.xlu0 %v533
        %v543 = vpop.xlane.xlu0 %542
        %v544 = vrcp.pop 128.0
        %v545 = vmul.f32 128.0, %v544
        %v546 = vsub.f32 1.0, %v545
        %v547 = vmul.f32 %v544, %v546
        %v548 = vadd.f32 %v544, %v547
        %vm549 = vweird.f32 %v544
        %v550 = vsel %vm549, %v544, %v548
        %v551 = vmul.f32 %v537, %v550
        %v552 = vmul.f32 %v539, %v550
        %v553 = vmul.f32 %v541, %v550
        %v554 = vmul.f32 %v543, %v550
        %v555 = vmul.f32 %v530, %v530
        %v556 = vmul.f32 %v531, %v531
        %v557 = vmul.f32 %v532, %v532
        %v558 = vmul.f32 %v533, %v533
        %559 = vadd.xlane.f32.xlu0 %v555
        %v560 = vpop.xlane.xlu0 %559
        %561 = vadd.xlane.f32.xlu0 %v556
        %v562 = vpop.xlane.xlu0 %561
        %563 = vadd.xlane.f32.xlu0 %v557
        %v564 = vpop.xlane.xlu0 %563
        %565 = vadd.xlane.f32.xlu0 %v558
        %v566 = vpop.xlane.xlu0 %565
        %v567 = vmul.f32 %v560, %v550
        %v568 = vmul.f32 %v562, %v550
        %v569 = vmul.f32 %v564, %v550
        %v570 = vmul.f32 %v566, %v550
        %v571 = vmul.f32 %v551, %v551
        %v572 = vmul.f32 %v552, %v552
        %v573 = vmul.f32 %v553, %v553
        %v574 = vmul.f32 %v554, %v554
        %v575 = vsub.f32 %v567, %v571
        %v576 = vsub.f32 %v568, %v572
        %v577 = vsub.f32 %v569, %v573
        %v578 = vsub.f32 %v570, %v574
        %v579 = vsub.f32 %v530, %v551
        %v580 = vsub.f32 %v531, %v552
        %v581 = vsub.f32 %v532, %v553
        %v582 = vsub.f32 %v533, %v554
        %v583 = vadd.f32 %v575, 1e-06
        %v584 = vadd.f32 %v576, 1e-06
        %v585 = vadd.f32 %v577, 1e-06
        %v586 = vadd.f32 %v578, 1e-06
        %v587 = vrsqrt.pop %v583
        %v588 = vmul.f32 %v587, %v583
        %v589 = vmul.f32 %v588, %v587
        %v590 = vmul.f32 0.5, %v589
        %v591 = vsub.f32 1.5, %v590
        %v592 = vmul.f32 %v587, %v591
        %vm593 = vweird.f32 %v583
        %vm594 = vweird.f32 %v587
        %vm595 = vmor %vm593, %vm594
        %v596 = vsel %vm595, %v587, %v592
        %v597 = vrsqrt.pop %v584
        %v598 = vmul.f32 %v597, %v584
        %v599 = vmul.f32 %v598, %v597
        %v600 = vmul.f32 0.5, %v599
        %v601 = vsub.f32 1.5, %v600
        %v602 = vmul.f32 %v597, %v601
        %vm603 = vweird.f32 %v584
        %vm604 = vweird.f32 %v597
        %vm605 = vmor %vm603, %vm604
        %v606 = vsel %vm605, %v597, %v602
        %v607 = vrsqrt.pop %v585
        %v608 = vmul.f32 %v607, %v585
        %v609 = vmul.f32 %v608, %v607
        %v610 = vmul.f32 0.5, %v609
        %v611 = vsub.f32 1.5, %v610
        %v612 = vmul.f32 %v607, %v611
        %vm613 = vweird.f32 %v585
        %vm614 = vweird.f32 %v607
        %vm615 = vmor %vm613, %vm614
        %v616 = vsel %vm615, %v607, %v612
        %v617 = vrsqrt.pop %v586
        %v618 = vmul.f32 %v617, %v586
        %v619 = vmul.f32 %v618, %v617
        %v620 = vmul.f32 0.5, %v619
        %v621 = vsub.f32 1.5, %v620
        %v622 = vmul.f32 %v617, %v621
        %vm623 = vweird.f32 %v586
        %vm624 = vweird.f32 %v617
        %vm625 = vmor %vm623, %vm624
        %v626 = vsel %vm625, %v617, %v622
        %v627 = vmul.f32 %v579, %v596
        %v628 = vmul.f32 %v580, %v606
        %v629 = vmul.f32 %v581, %v616
        %v630 = vmul.f32 %v582, %v626
        %v632 = vperm.slane %v534, 0
        %v634 = vmul.f32 %v627, %v632
        %v635 = vmul.f32 %v628, %v632
        %v636 = vmul.f32 %v629, %v632
        %v637 = vmul.f32 %v630, %v632
        %v639 = vperm.slane %v535, 0
        %v641 = vadd.f32 %v634, %v639
        %v642 = vadd.f32 %v635, %v639
        %v643 = vadd.f32 %v636, %v639
        %v644 = vadd.f32 %v637, %v639
        %v645 = vpack.c.bf16 %v642, %v641
        %v646 = vpack.c.bf16 %v644, %v643
        %v647 = vld [vmem:[#allocation5] sm:$0xff]
        %v648 = vld [vmem:[#allocation5 + $0x8] sm:$0xf]
        %v649 = vld [vmem:[#allocation5 + $0xc] sm:$0xff]
        %v650 = vld [vmem:[#allocation5 + $0x14] sm:$0xf]
        %v651 = vld [vmem:[#allocation5 + $0x18] sm:$0xff]
        %v652 = vld [vmem:[#allocation5 + $0x20] sm:$0xf]
        %v653 = vld [vmem:[#allocation5 + $0x24] sm:$0xff]
        %v654 = vld [vmem:[#allocation5 + $0x2c] sm:$0xf]
        %v655 = vld [vmem:[#allocation5 + $0x30] sm:$0xff]
        %v656 = vld [vmem:[#allocation5 + $0x38] sm:$0xf]
        %v657 = vld [vmem:[#allocation5 + $0x3c] sm:$0xff]
        %v658 = vld [vmem:[#allocation5 + $0x44] sm:$0xf]
        %v659 = vld [vmem:[#allocation5 + $0x48] sm:$0xff]
        %v660 = vld [vmem:[#allocation5 + $0x50] sm:$0xf]
        %v661 = vld [vmem:[#allocation5 + $0x54] sm:$0xff]
        %v662 = vld [vmem:[#allocation5 + $0x5c] sm:$0xf]
        %v663 = vld [vmem:[#allocation5 + $0x60] sm:$0xff]
        %v664 = vld [vmem:[#allocation5 + $0x68] sm:$0xf]
        %v665 = vld [vmem:[#allocation5 + $0x6c] sm:$0xff]
        %v666 = vld [vmem:[#allocation5 + $0x74] sm:$0xf]
        %v667 = vld [vmem:[#allocation5 + $0x78] sm:$0xff]
        %v668 = vld [vmem:[#allocation5 + $0x80] sm:$0xf]
        %v669 = vld [vmem:[#allocation5 + $0x84] sm:$0xff]
        %v670 = vld [vmem:[#allocation5 + $0x8c] sm:$0xf]
        %v671 = vld [vmem:[#allocation5 + $0x90] sm:$0xff]
        %v672 = vld [vmem:[#allocation5 + $0x98] sm:$0xf]
        %v673 = vld [vmem:[#allocation5 + $0x9c] sm:$0xff]
        %v674 = vld [vmem:[#allocation5 + $0xa4] sm:$0xf]
        %v675 = vld [vmem:[#allocation5 + $0xa8] sm:$0xff]
        %v676 = vld [vmem:[#allocation5 + $0xb0] sm:$0xf]
        %v677 = vld [vmem:[#allocation5 + $0xb4] sm:$0xff]
        %v678 = vld [vmem:[#allocation5 + $0xbc] sm:$0xf]
        %v711 = vunpack.c.l.b16 %v647
        %v712 = vunpack.c.h.b16 %v647
        %v713 = vunpack.c.l.b16 %v648
        %v714 = vunpack.c.l.b16 %v649
        %v715 = vunpack.c.h.b16 %v649
        %v716 = vunpack.c.l.b16 %v650
        %v717 = vunpack.c.l.b16 %v651
        %v718 = vunpack.c.h.b16 %v651
        %v719 = vunpack.c.l.b16 %v652
        %v720 = vunpack.c.l.b16 %v653
        %v721 = vunpack.c.h.b16 %v653
        %v722 = vunpack.c.l.b16 %v654
        %v723 = vunpack.c.l.b16 %v655
        %v724 = vunpack.c.h.b16 %v655
        %v725 = vunpack.c.l.b16 %v656
        %v726 = vunpack.c.l.b16 %v657
        %v727 = vunpack.c.h.b16 %v657
        %v728 = vunpack.c.l.b16 %v658
        %v729 = vunpack.c.l.b16 %v659
        %v730 = vunpack.c.h.b16 %v659
        %v731 = vunpack.c.l.b16 %v660
        %v732 = vunpack.c.l.b16 %v661
        %v733 = vunpack.c.h.b16 %v661
        %v734 = vunpack.c.l.b16 %v662
        %v735 = vunpack.c.l.b16 %v663
        %v736 = vunpack.c.h.b16 %v663
        %v737 = vunpack.c.l.b16 %v664
        %v738 = vunpack.c.l.b16 %v665
        %v739 = vunpack.c.h.b16 %v665
        %v740 = vunpack.c.l.b16 %v666
        %v741 = vunpack.c.l.b16 %v667
        %v742 = vunpack.c.h.b16 %v667
        %v743 = vunpack.c.l.b16 %v668
        %v744 = vunpack.c.l.b16 %v669
        %v745 = vunpack.c.h.b16 %v669
        %v746 = vunpack.c.l.b16 %v670
        %v747 = vunpack.c.l.b16 %v671
        %v748 = vunpack.c.h.b16 %v671
        %v749 = vunpack.c.l.b16 %v672
        %v750 = vunpack.c.l.b16 %v673
        %v751 = vunpack.c.h.b16 %v673
        %v752 = vunpack.c.l.b16 %v674
        %v753 = vunpack.c.l.b16 %v675
        %v754 = vunpack.c.h.b16 %v675
        %v755 = vunpack.c.l.b16 %v676
        %v756 = vunpack.c.l.b16 %v677
        %v757 = vunpack.c.h.b16 %v677
        %v758 = vunpack.c.l.b16 %v678
        %v759 = vpack.c.b16 %v714, %v711
        %v760 = vpack.c.b16 %v715, %v712
        %v761 = vpack.c.b16 %v716, %v713
        %v762 = vpack.c.b16 %v720, %v717
        %v763 = vpack.c.b16 %v721, %v718
        %v764 = vpack.c.b16 %v722, %v719
        %v765 = vpack.c.b16 %v726, %v723
        %v766 = vpack.c.b16 %v727, %v724
        %v767 = vpack.c.b16 %v728, %v725
        %v768 = vpack.c.b16 %v732, %v729
        %v769 = vpack.c.b16 %v733, %v730
        %v770 = vpack.c.b16 %v734, %v731
        %v771 = vpack.c.b16 %v738, %v735
        %v772 = vpack.c.b16 %v739, %v736
        %v773 = vpack.c.b16 %v740, %v737
        %v774 = vpack.c.b16 %v744, %v741
        %v775 = vpack.c.b16 %v745, %v742
        %v776 = vpack.c.b16 %v746, %v743
        %v777 = vpack.c.b16 %v750, %v747
        %v778 = vpack.c.b16 %v751, %v748
        %v779 = vpack.c.b16 %v752, %v749
        %v780 = vpack.c.b16 %v756, %v753
        %v781 = vpack.c.b16 %v757, %v754
        %v782 = vpack.c.b16 %v758, %v755
        %807 = vmatpush.bf16.msra.mxu0 %v780
        %808 = vmatpush.bf16.msra.mxu0 %v777
        %809 = vmatpush.bf16.msra.mxu0 %v774
        %810 = vmatpush.bf16.msra.mxu0 %v771
        %811 = vmatpush.bf16.msra.mxu0 %v768
        %812 = vmatpush.bf16.msra.mxu0 %v765
        %813 = vmatpush.bf16.msra.mxu0 %v762
        %814 = vmatpush.bf16.msra.mxu0 %v759
        %815 = vmatmul.bf16.gmra.mxu0 %v645
        %v816 = vpop.f32.mrf.mxu0
        %v817 = vadd.f32 0.0, %v816
        %v818 = vpop.f32.mrf.mxu0
        %v819 = vadd.f32 0.0, %v818
        %820 = vmatmul.bf16.gmra.mxu0 %v646
        %v821 = vpop.f32.mrf.mxu0
        %v822 = vadd.f32 0.0, %v821
        %v823 = vpop.f32.mrf.mxu0
        %v824 = vadd.f32 0.0, %v823
        %825 = vdwg.mxu0
        %826 = vmatpush.bf16.msra.mxu0 %v781
        %827 = vmatpush.bf16.msra.mxu0 %v778
        %828 = vmatpush.bf16.msra.mxu0 %v775
        %829 = vmatpush.bf16.msra.mxu0 %v772
        %830 = vmatpush.bf16.msra.mxu0 %v769
        %831 = vmatpush.bf16.msra.mxu0 %v766
        %832 = vmatpush.bf16.msra.mxu0 %v763
        %833 = vmatpush.bf16.msra.mxu0 %v760
        %834 = vmatmul.bf16.gmra.mxu0 %v645
        %v835 = vpop.f32.mrf.mxu0
        %v836 = vadd.f32 0.0, %v835
        %v837 = vpop.f32.mrf.mxu0
        %v838 = vadd.f32 0.0, %v837
        %839 = vmatmul.bf16.gmra.mxu0 %v646
        %v840 = vpop.f32.mrf.mxu0
        %v841 = vadd.f32 0.0, %v840
        %v842 = vpop.f32.mrf.mxu0
        %v843 = vadd.f32 0.0, %v842
        %844 = vdwg.mxu0
        %845 = vmatpush.bf16.msra.mxu0 %v782
        %846 = vmatpush.bf16.msra.mxu0 %v779
        %847 = vmatpush.bf16.msra.mxu0 %v776
        %848 = vmatpush.bf16.msra.mxu0 %v773
        %849 = vmatpush.bf16.msra.mxu0 %v770
        %850 = vmatpush.bf16.msra.mxu0 %v767
        %851 = vmatpush.bf16.msra.mxu0 %v764
        %852 = vmatpush.bf16.msra.mxu0 %v761
        %853 = vmatmul.bf16.gmra.mxu0 %v645
        %v854 = vpop.f32.mrf.mxu0
        %v855 = vadd.f32 0.0, %v854
        %v856 = vpop.f32.mrf.mxu0
        %v857 = vadd.f32 0.0, %v856
        %858 = vmatmul.bf16.gmra.mxu0 %v646
        %v859 = vpop.f32.mrf.mxu0
        %v860 = vadd.f32 0.0, %v859
        %v861 = vpop.f32.mrf.mxu0
        %v862 = vadd.f32 0.0, %v861
        %863 = vdwg.mxu0
        %v864 = vpack.c.bf16 %v819, %v817
        %v865 = vpack.c.bf16 %v824, %v822
        %v866 = vpack.c.bf16 %v838, %v836
        %v867 = vpack.c.bf16 %v843, %v841
        %vm868 = vcmask 261120
        %v870 = vsel %vm868, %v864, 0
        %v873 = vsel %vm868, %v865, 0
        %v876 = vsel %vm868, %v866, 0
        %v879 = vsel %vm868, %v867, 0
        %881 = vmatpush.bf16.xpose.msra.mxu0 0
        %882 = vmatpush.bf16.xpose.msra.mxu0 0
        %883 = vmatpush.bf16.xpose.msra.mxu0 0
        %884 = vmatpush.bf16.xpose.msra.mxu0 0
        %885 = vmatpush.bf16.xpose.msra.mxu0 0
        %886 = vmatpush.bf16.xpose.msra.mxu0 0
        %887 = vmatpush.bf16.xpose.msra.mxu0 %v879
        %888 = vmatpush.bf16.xpose.msra.mxu0 %v876
        %889 = vmatmul.bf16.gmra.mxu0 %v870
        %v890 = vpop.f32.mrf.mxu0
        %v891 = vadd.f32 0.0, %v890
        %v892 = vpop.f32.mrf.mxu0
        %v893 = vadd.f32 0.0, %v892
        %894 = vmatmul.bf16.gmra.mxu0 %v873
        %v895 = vpop.f32.mrf.mxu0
        %v896 = vadd.f32 0.0, %v895
        %v897 = vpop.f32.mrf.mxu0
        %v898 = vadd.f32 0.0, %v897
        %899 = vdwg.mxu0
        %v900 = vsel %vm868, %v891, -inf
        %901 = vmax.xlane.f32.xlu0 %v900
        %v902 = vpop.xlane.xlu0 %901
        %v903 = vsel %vm868, %v893, -inf
        %904 = vmax.xlane.f32.xlu0 %v903
        %v905 = vpop.xlane.xlu0 %904
        %v906 = vsel %vm868, %v896, -inf
        %907 = vmax.xlane.f32.xlu0 %v906
        %v908 = vpop.xlane.xlu0 %907
        %v909 = vsel %vm868, %v898, -inf
        %910 = vmax.xlane.f32.xlu0 %v909
        %v911 = vpop.xlane.xlu0 %910
        %v912 = vsub.f32 %v891, %v902
        %v913 = vsub.f32 %v893, %v905
        %v914 = vsub.f32 %v896, %v908
        %v915 = vsub.f32 %v898, %v911
        %v916 = vmul.f32 %v912, 1.442695
        %v917 = vpow.pop %v916
        %v918 = vmul.f32 %v913, 1.442695
        %v919 = vpow.pop %v918
        %v920 = vmul.f32 %v914, 1.442695
        %v921 = vpow.pop %v920
        %v922 = vmul.f32 %v915, 1.442695
        %v923 = vpow.pop %v922
        %v924 = vsel %vm868, %v917, 0.0
        %925 = vadd.xlane.f32.xlu0 %v924
        %v926 = vpop.xlane.xlu0 %925
        %v927 = vsel %vm868, %v919, 0.0
        %928 = vadd.xlane.f32.xlu0 %v927
        %v929 = vpop.xlane.xlu0 %928
        %v930 = vsel %vm868, %v921, 0.0
        %931 = vadd.xlane.f32.xlu0 %v930
        %v932 = vpop.xlane.xlu0 %931
        %v933 = vsel %vm868, %v923, 0.0
        %934 = vadd.xlane.f32.xlu0 %v933
        %v935 = vpop.xlane.xlu0 %934
        %v936 = vrcp.pop %v926
        %v937 = vrcp.pop %v929
        %v938 = vrcp.pop %v932
        %v939 = vrcp.pop %v935
        %v940 = vmul.f32 %v917, %v936
        %v941 = vmul.f32 %v919, %v937
        %v942 = vmul.f32 %v921, %v938
        %v943 = vmul.f32 %v923, %v939
        %v944 = vpack.c.bf16 %v941, %v940
        %v945 = vpack.c.bf16 %v943, %v942
        %v946 = vpack.c.bf16 %v857, %v855
        %v947 = vpack.c.bf16 %v862, %v860
        %v949 = vsel %vm868, %v944, 0
        %v952 = vsel %vm868, %v945, 0
        %954 = vmatpush.bf16.msra.mxu0 0
        %955 = vmatpush.bf16.msra.mxu0 0
        %956 = vmatpush.bf16.msra.mxu0 0
        %957 = vmatpush.bf16.msra.mxu0 0
        %958 = vmatpush.bf16.msra.mxu0 0
        %959 = vmatpush.bf16.msra.mxu0 0
        %960 = vmatpush.bf16.msra.mxu0 %v947
        %961 = vmatpush.bf16.msra.mxu0 %v946
        %962 = vmatmul.bf16.gmra.mxu0 %v949
        %v963 = vpop.f32.mrf.mxu0
        %v964 = vadd.f32 0.0, %v963
        %v965 = vpop.f32.mrf.mxu0
        %v966 = vadd.f32 0.0, %v965
        %967 = vmatmul.bf16.gmra.mxu0 %v952
        %v968 = vpop.f32.mrf.mxu0
        %v969 = vadd.f32 0.0, %v968
        %v970 = vpop.f32.mrf.mxu0
        %v971 = vadd.f32 0.0, %v970
        %972 = vdwg.mxu0
        %975 = vrot.lane.b32.xlu0 %v864, 96
        %v976 = vpop.permute.xlu0 %975
        %977 = vrot.lane.b32.xlu0 %v865, 96
        %v978 = vpop.permute.xlu0 %977
        %981 = vrot.lane.b32.xlu0 %v866, 96
        %v982 = vpop.permute.xlu0 %981
        %983 = vrot.lane.b32.xlu0 %v867, 96
        %v984 = vpop.permute.xlu0 %983
        %v986 = vsel %vm868, %v976, 0
        %v989 = vsel %vm868, %v978, 0
        %v992 = vsel %vm868, %v982, 0
        %v995 = vsel %vm868, %v984, 0
        %997 = vmatpush.bf16.xpose.msra.mxu0 0
        %998 = vmatpush.bf16.xpose.msra.mxu0 0
        %999 = vmatpush.bf16.xpose.msra.mxu0 0
        %1000 = vmatpush.bf16.xpose.msra.mxu0 0
        %1001 = vmatpush.bf16.xpose.msra.mxu0 0
        %1002 = vmatpush.bf16.xpose.msra.mxu0 0
        %1003 = vmatpush.bf16.xpose.msra.mxu0 %v995
        %1004 = vmatpush.bf16.xpose.msra.mxu0 %v992
        %1005 = vmatmul.bf16.gmra.mxu0 %v986
        %v1006 = vpop.f32.mrf.mxu0
        %v1007 = vadd.f32 0.0, %v1006
        %v1008 = vpop.f32.mrf.mxu0
        %v1009 = vadd.f32 0.0, %v1008
        %1010 = vmatmul.bf16.gmra.mxu0 %v989
        %v1011 = vpop.f32.mrf.mxu0
        %v1012 = vadd.f32 0.0, %v1011
        %v1013 = vpop.f32.mrf.mxu0
        %v1014 = vadd.f32 0.0, %v1013
        %1015 = vdwg.mxu0
        %v1016 = vsel %vm868, %v1007, -inf
        %1017 = vmax.xlane.f32.xlu0 %v1016
        %v1018 = vpop.xlane.xlu0 %1017
        %v1019 = vsel %vm868, %v1009, -inf
        %1020 = vmax.xlane.f32.xlu0 %v1019
        %v1021 = vpop.xlane.xlu0 %1020
        %v1022 = vsel %vm868, %v1012, -inf
        %1023 = vmax.xlane.f32.xlu0 %v1022
        %v1024 = vpop.xlane.xlu0 %1023
        %v1025 = vsel %vm868, %v1014, -inf
        %1026 = vmax.xlane.f32.xlu0 %v1025
        %v1027 = vpop.xlane.xlu0 %1026
        %v1028 = vsub.f32 %v1007, %v1018
        %v1029 = vsub.f32 %v1009, %v1021
        %v1030 = vsub.f32 %v1012, %v1024
        %v1031 = vsub.f32 %v1014, %v1027
        %v1032 = vmul.f32 %v1028, 1.442695
        %v1033 = vpow.pop %v1032
        %v1034 = vmul.f32 %v1029, 1.442695
        %v1035 = vpow.pop %v1034
        %v1036 = vmul.f32 %v1030, 1.442695
        %v1037 = vpow.pop %v1036
        %v1038 = vmul.f32 %v1031, 1.442695
        %v1039 = vpow.pop %v1038
        %v1040 = vsel %vm868, %v1033, 0.0
        %1041 = vadd.xlane.f32.xlu0 %v1040
        %v1042 = vpop.xlane.xlu0 %1041
        %v1043 = vsel %vm868, %v1035, 0.0
        %1044 = vadd.xlane.f32.xlu0 %v1043
        %v1045 = vpop.xlane.xlu0 %1044
        %v1046 = vsel %vm868, %v1037, 0.0
        %1047 = vadd.xlane.f32.xlu0 %v1046
        %v1048 = vpop.xlane.xlu0 %1047
        %v1049 = vsel %vm868, %v1039, 0.0
        %1050 = vadd.xlane.f32.xlu0 %v1049
        %v1051 = vpop.xlane.xlu0 %1050
        %v1052 = vrcp.pop %v1042
        %v1053 = vrcp.pop %v1045
        %v1054 = vrcp.pop %v1048
        %v1055 = vrcp.pop %v1051
        %v1056 = vmul.f32 %v1033, %v1052
        %v1057 = vmul.f32 %v1035, %v1053
        %v1058 = vmul.f32 %v1037, %v1054
        %v1059 = vmul.f32 %v1039, %v1055
        %v1060 = vpack.c.bf16 %v1057, %v1056
        %v1061 = vpack.c.bf16 %v1059, %v1058
        %1064 = vrot.lane.b32.xlu0 %v946, 96
        %v1065 = vpop.permute.xlu0 %1064
        %1066 = vrot.lane.b32.xlu0 %v947, 96
        %v1067 = vpop.permute.xlu0 %1066
        %v1071 = vsel %vm868, %v1060, 0
        %v1074 = vsel %vm868, %v1061, 0
        %1076 = vmatpush.bf16.msra.mxu0 0
        %1077 = vmatpush.bf16.msra.mxu0 0
        %1078 = vmatpush.bf16.msra.mxu0 0
        %1079 = vmatpush.bf16.msra.mxu0 0
        %1080 = vmatpush.bf16.msra.mxu0 0
        %1081 = vmatpush.bf16.msra.mxu0 0
        %1082 = vmatpush.bf16.msra.mxu0 %v1067
        %1083 = vmatpush.bf16.msra.mxu0 %v1065
        %1084 = vmatmul.bf16.gmra.mxu0 %v1071
        %v1085 = vpop.f32.mrf.mxu0
        %v1086 = vadd.f32 0.0, %v1085
        %v1087 = vpop.f32.mrf.mxu0
        %v1088 = vadd.f32 0.0, %v1087
        %1089 = vmatmul.bf16.gmra.mxu0 %v1074
        %v1090 = vpop.f32.mrf.mxu0
        %v1091 = vadd.f32 0.0, %v1090
        %v1092 = vpop.f32.mrf.mxu0
        %v1093 = vadd.f32 0.0, %v1092
        %1094 = vdwg.mxu0
        %1095 = vrot.lane.b32.xlu0 %v864, 64
        %v1096 = vpop.permute.xlu0 %1095
        %1097 = vrot.lane.b32.xlu0 %v865, 64
        %v1098 = vpop.permute.xlu0 %1097
        %1099 = vrot.lane.b32.xlu0 %v866, 64
        %v1100 = vpop.permute.xlu0 %1099
        %1101 = vrot.lane.b32.xlu0 %v867, 64
        %v1102 = vpop.permute.xlu0 %1101
        %v1104 = vsel %vm868, %v1096, 0
        %v1107 = vsel %vm868, %v1098, 0
        %v1110 = vsel %vm868, %v1100, 0
        %v1113 = vsel %vm868, %v1102, 0
        %1115 = vmatpush.bf16.xpose.msra.mxu0 0
        %1116 = vmatpush.bf16.xpose.msra.mxu0 0
        %1117 = vmatpush.bf16.xpose.msra.mxu0 0
        %1118 = vmatpush.bf16.xpose.msra.mxu0 0
        %1119 = vmatpush.bf16.xpose.msra.mxu0 0
        %1120 = vmatpush.bf16.xpose.msra.mxu0 0
        %1121 = vmatpush.bf16.xpose.msra.mxu0 %v1113
        %1122 = vmatpush.bf16.xpose.msra.mxu0 %v1110
        %1123 = vmatmul.bf16.gmra.mxu0 %v1104
        %v1124 = vpop.f32.mrf.mxu0
        %v1125 = vadd.f32 0.0, %v1124
        %v1126 = vpop.f32.mrf.mxu0
        %v1127 = vadd.f32 0.0, %v1126
        %1128 = vmatmul.bf16.gmra.mxu0 %v1107
        %v1129 = vpop.f32.mrf.mxu0
        %v1130 = vadd.f32 0.0, %v1129
        %v1131 = vpop.f32.mrf.mxu0
        %v1132 = vadd.f32 0.0, %v1131
        %1133 = vdwg.mxu0
        %v1134 = vsel %vm868, %v1125, -inf
        %1135 = vmax.xlane.f32.xlu0 %v1134
        %v1136 = vpop.xlane.xlu0 %1135
        %v1137 = vsel %vm868, %v1127, -inf
        %1138 = vmax.xlane.f32.xlu0 %v1137
        %v1139 = vpop.xlane.xlu0 %1138
        %v1140 = vsel %vm868, %v1130, -inf
        %1141 = vmax.xlane.f32.xlu0 %v1140
        %v1142 = vpop.xlane.xlu0 %1141
        %v1143 = vsel %vm868, %v1132, -inf
        %1144 = vmax.xlane.f32.xlu0 %v1143
        %v1145 = vpop.xlane.xlu0 %1144
        %v1146 = vsub.f32 %v1125, %v1136
        %v1147 = vsub.f32 %v1127, %v1139
        %v1148 = vsub.f32 %v1130, %v1142
        %v1149 = vsub.f32 %v1132, %v1145
        %v1150 = vmul.f32 %v1146, 1.442695
        %v1151 = vpow.pop %v1150
        %v1152 = vmul.f32 %v1147, 1.442695
        %v1153 = vpow.pop %v1152
        %v1154 = vmul.f32 %v1148, 1.442695
        %v1155 = vpow.pop %v1154
        %v1156 = vmul.f32 %v1149, 1.442695
        %v1157 = vpow.pop %v1156
        %v1158 = vsel %vm868, %v1151, 0.0
        %1159 = vadd.xlane.f32.xlu0 %v1158
        %v1160 = vpop.xlane.xlu0 %1159
        %v1161 = vsel %vm868, %v1153, 0.0
        %1162 = vadd.xlane.f32.xlu0 %v1161
        %v1163 = vpop.xlane.xlu0 %1162
        %v1164 = vsel %vm868, %v1155, 0.0
        %1165 = vadd.xlane.f32.xlu0 %v1164
        %v1166 = vpop.xlane.xlu0 %1165
        %v1167 = vsel %vm868, %v1157, 0.0
        %1168 = vadd.xlane.f32.xlu0 %v1167
        %v1169 = vpop.xlane.xlu0 %1168
        %v1170 = vrcp.pop %v1160
        %v1171 = vrcp.pop %v1163
        %v1172 = vrcp.pop %v1166
        %v1173 = vrcp.pop %v1169
        %v1174 = vmul.f32 %v1151, %v1170
        %v1175 = vmul.f32 %v1153, %v1171
        %v1176 = vmul.f32 %v1155, %v1172
        %v1177 = vmul.f32 %v1157, %v1173
        %v1178 = vpack.c.bf16 %v1175, %v1174
        %v1179 = vpack.c.bf16 %v1177, %v1176
        %1180 = vrot.lane.b32.xlu0 %v946, 64
        %v1181 = vpop.permute.xlu0 %1180
        %1182 = vrot.lane.b32.xlu0 %v947, 64
        %v1183 = vpop.permute.xlu0 %1182
        %v1187 = vsel %vm868, %v1178, 0
        %v1190 = vsel %vm868, %v1179, 0
        %1192 = vmatpush.bf16.msra.mxu0 0
        %1193 = vmatpush.bf16.msra.mxu0 0
        %1194 = vmatpush.bf16.msra.mxu0 0
        %1195 = vmatpush.bf16.msra.mxu0 0
        %1196 = vmatpush.bf16.msra.mxu0 0
        %1197 = vmatpush.bf16.msra.mxu0 0
        %1198 = vmatpush.bf16.msra.mxu0 %v1183
        %1199 = vmatpush.bf16.msra.mxu0 %v1181
        %1200 = vmatmul.bf16.gmra.mxu0 %v1187
        %v1201 = vpop.f32.mrf.mxu0
        %v1202 = vadd.f32 0.0, %v1201
        %v1203 = vpop.f32.mrf.mxu0
        %v1204 = vadd.f32 0.0, %v1203
        %1205 = vmatmul.bf16.gmra.mxu0 %v1190
        %v1206 = vpop.f32.mrf.mxu0
        %v1207 = vadd.f32 0.0, %v1206
        %v1208 = vpop.f32.mrf.mxu0
        %v1209 = vadd.f32 0.0, %v1208
        %1210 = vdwg.mxu0
        %1211 = vrot.lane.b32.xlu0 %v864, 32
        %v1212 = vpop.permute.xlu0 %1211
        %1213 = vrot.lane.b32.xlu0 %v865, 32
        %v1214 = vpop.permute.xlu0 %1213
        %1215 = vrot.lane.b32.xlu0 %v866, 32
        %v1216 = vpop.permute.xlu0 %1215
        %1217 = vrot.lane.b32.xlu0 %v867, 32
        %v1218 = vpop.permute.xlu0 %1217
        %v1220 = vsel %vm868, %v1212, 0
        %v1223 = vsel %vm868, %v1214, 0
        %v1226 = vsel %vm868, %v1216, 0
        %v1229 = vsel %vm868, %v1218, 0
        %1231 = vmatpush.bf16.xpose.msra.mxu0 0
        %1232 = vmatpush.bf16.xpose.msra.mxu0 0
        %1233 = vmatpush.bf16.xpose.msra.mxu0 0
        %1234 = vmatpush.bf16.xpose.msra.mxu0 0
        %1235 = vmatpush.bf16.xpose.msra.mxu0 0
        %1236 = vmatpush.bf16.xpose.msra.mxu0 0
        %1237 = vmatpush.bf16.xpose.msra.mxu0 %v1229
        %1238 = vmatpush.bf16.xpose.msra.mxu0 %v1226
        %1239 = vmatmul.bf16.gmra.mxu0 %v1220
        %v1240 = vpop.f32.mrf.mxu0
        %v1241 = vadd.f32 0.0, %v1240
        %v1242 = vpop.f32.mrf.mxu0
        %v1243 = vadd.f32 0.0, %v1242
        %1244 = vmatmul.bf16.gmra.mxu0 %v1223
        %v1245 = vpop.f32.mrf.mxu0
        %v1246 = vadd.f32 0.0, %v1245
        %v1247 = vpop.f32.mrf.mxu0
        %v1248 = vadd.f32 0.0, %v1247
        %1249 = vdwg.mxu0
        %v1250 = vsel %vm868, %v1241, -inf
        %1251 = vmax.xlane.f32.xlu0 %v1250
        %v1252 = vpop.xlane.xlu0 %1251
        %v1253 = vsel %vm868, %v1243, -inf
        %1254 = vmax.xlane.f32.xlu0 %v1253
        %v1255 = vpop.xlane.xlu0 %1254
        %v1256 = vsel %vm868, %v1246, -inf
        %1257 = vmax.xlane.f32.xlu0 %v1256
        %v1258 = vpop.xlane.xlu0 %1257
        %v1259 = vsel %vm868, %v1248, -inf
        %1260 = vmax.xlane.f32.xlu0 %v1259
        %v1261 = vpop.xlane.xlu0 %1260
        %v1262 = vsub.f32 %v1241, %v1252
        %v1263 = vsub.f32 %v1243, %v1255
        %v1264 = vsub.f32 %v1246, %v1258
        %v1265 = vsub.f32 %v1248, %v1261
        %v1266 = vmul.f32 %v1262, 1.442695
        %v1267 = vpow.pop %v1266
        %v1268 = vmul.f32 %v1263, 1.442695
        %v1269 = vpow.pop %v1268
        %v1270 = vmul.f32 %v1264, 1.442695
        %v1271 = vpow.pop %v1270
        %v1272 = vmul.f32 %v1265, 1.442695
        %v1273 = vpow.pop %v1272
        %v1274 = vsel %vm868, %v1267, 0.0
        %1275 = vadd.xlane.f32.xlu0 %v1274
        %v1276 = vpop.xlane.xlu0 %1275
        %v1277 = vsel %vm868, %v1269, 0.0
        %1278 = vadd.xlane.f32.xlu0 %v1277
        %v1279 = vpop.xlane.xlu0 %1278
        %v1280 = vsel %vm868, %v1271, 0.0
        %1281 = vadd.xlane.f32.xlu0 %v1280
        %v1282 = vpop.xlane.xlu0 %1281
        %v1283 = vsel %vm868, %v1273, 0.0
        %1284 = vadd.xlane.f32.xlu0 %v1283
        %v1285 = vpop.xlane.xlu0 %1284
        %v1286 = vrcp.pop %v1276
        %v1287 = vrcp.pop %v1279
        %v1288 = vrcp.pop %v1282
        %v1289 = vrcp.pop %v1285
        %v1290 = vmul.f32 %v1267, %v1286
        %v1291 = vmul.f32 %v1269, %v1287
        %v1292 = vmul.f32 %v1271, %v1288
        %v1293 = vmul.f32 %v1273, %v1289
        %v1294 = vpack.c.bf16 %v1291, %v1290
        %v1295 = vpack.c.bf16 %v1293, %v1292
        %1296 = vrot.lane.b32.xlu0 %v946, 32
        %v1297 = vpop.permute.xlu0 %1296
        %1298 = vrot.lane.b32.xlu0 %v947, 32
        %v1299 = vpop.permute.xlu0 %1298
        %v1303 = vsel %vm868, %v1294, 0
        %v1306 = vsel %vm868, %v1295, 0
        %1308 = vmatpush.bf16.msra.mxu0 0
        %1309 = vmatpush.bf16.msra.mxu0 0
        %1310 = vmatpush.bf16.msra.mxu0 0
        %1311 = vmatpush.bf16.msra.mxu0 0
        %1312 = vmatpush.bf16.msra.mxu0 0
        %1313 = vmatpush.bf16.msra.mxu0 0
        %1314 = vmatpush.bf16.msra.mxu0 %v1299
        %1315 = vmatpush.bf16.msra.mxu0 %v1297
        %1316 = vmatmul.bf16.gmra.mxu0 %v1303
        %v1317 = vpop.f32.mrf.mxu0
        %v1318 = vadd.f32 0.0, %v1317
        %v1319 = vpop.f32.mrf.mxu0
        %v1320 = vadd.f32 0.0, %v1319
        %1321 = vmatmul.bf16.gmra.mxu0 %v1306
        %v1322 = vpop.f32.mrf.mxu0
        %v1323 = vadd.f32 0.0, %v1322
        %v1324 = vpop.f32.mrf.mxu0
        %v1325 = vadd.f32 0.0, %v1324
        %1326 = vdwg.mxu0
        %1331 = vrot.lane.b32.xlu0 %v1086, 32
        %v1332 = vpop.permute.xlu0 %1331
        %1333 = vrot.lane.b32.xlu0 %v1088, 32
        %v1334 = vpop.permute.xlu0 %1333
        %1335 = vrot.lane.b32.xlu0 %v1091, 32
        %v1336 = vpop.permute.xlu0 %1335
        %1337 = vrot.lane.b32.xlu0 %v1093, 32
        %v1338 = vpop.permute.xlu0 %1337
        %1347 = vrot.lane.b32.xlu0 %v1202, 64
        %v1348 = vpop.permute.xlu0 %1347
        %1349 = vrot.lane.b32.xlu0 %v1204, 64
        %v1350 = vpop.permute.xlu0 %1349
        %1351 = vrot.lane.b32.xlu0 %v1207, 64
        %v1352 = vpop.permute.xlu0 %1351
        %1353 = vrot.lane.b32.xlu0 %v1209, 64
        %v1354 = vpop.permute.xlu0 %1353
        %1363 = vrot.lane.b32.xlu0 %v1318, 96
        %v1364 = vpop.permute.xlu0 %1363
        %1365 = vrot.lane.b32.xlu0 %v1320, 96
        %v1366 = vpop.permute.xlu0 %1365
        %1367 = vrot.lane.b32.xlu0 %v1323, 96
        %v1368 = vpop.permute.xlu0 %1367
        %1369 = vrot.lane.b32.xlu0 %v1325, 96
        %v1370 = vpop.permute.xlu0 %1369
        %v1375 = vsel %vm868, %v964, %v1332
        %v1376 = vsel %vm868, %v966, %v1334
        %v1377 = vsel %vm868, %v969, %v1336
        %v1378 = vsel %vm868, %v971, %v1338
        %vm1379 = vcmask 523264
        %v1380 = vsel %vm1379, %v1375, %v1348
        %v1381 = vsel %vm1379, %v1376, %v1350
        %v1382 = vsel %vm1379, %v1377, %v1352
        %v1383 = vsel %vm1379, %v1378, %v1354
        %vm1384 = vcmask 785408
        %v1385 = vsel %vm1384, %v1380, %v1364
        %v1386 = vsel %vm1384, %v1381, %v1366
        %v1387 = vsel %vm1384, %v1382, %v1368
        %v1388 = vsel %vm1384, %v1383, %v1370
        %v1389 = vpack.c.bf16 %v1386, %v1385
        %v1390 = vpack.c.bf16 %v1388, %v1387
        %v1391 = vld [vmem:[#allocation7] sm:$0xf]
        %v1392 = vld [vmem:[#allocation7 + $0x4] sm:$0xf]
        %v1393 = vld [vmem:[#allocation7 + $0x8] sm:$0xf]
        %v1394 = vld [vmem:[#allocation7 + $0xc] sm:$0xf]
        %v1395 = vld [vmem:[#allocation7 + $0x10] sm:$0xf]
        %v1396 = vld [vmem:[#allocation7 + $0x14] sm:$0xf]
        %v1397 = vld [vmem:[#allocation7 + $0x18] sm:$0xf]
        %v1398 = vld [vmem:[#allocation7 + $0x1c] sm:$0xf]
        %v1399 = vld [vmem:[#allocation7 + $0x20] sm:$0xf]
        %v1400 = vld [vmem:[#allocation7 + $0x24] sm:$0xf]
        %v1401 = vld [vmem:[#allocation7 + $0x28] sm:$0xf]
        %v1402 = vld [vmem:[#allocation7 + $0x2c] sm:$0xf]
        %v1403 = vld [vmem:[#allocation7 + $0x30] sm:$0xf]
        %v1404 = vld [vmem:[#allocation7 + $0x34] sm:$0xf]
        %v1405 = vld [vmem:[#allocation7 + $0x38] sm:$0xf]
        %v1406 = vld [vmem:[#allocation7 + $0x3c] sm:$0xf]
        %v1407 = vld [vmem:[%s3] sm:$0x1]
        %v1409 = vperm.slane %v1407, 0
        %v1427 = vunpack.c.l.b16 %v1391
        %v1428 = vunpack.c.l.b16 %v1392
        %v1429 = vunpack.c.l.b16 %v1393
        %v1430 = vunpack.c.l.b16 %v1394
        %v1431 = vunpack.c.l.b16 %v1395
        %v1432 = vunpack.c.l.b16 %v1396
        %v1433 = vunpack.c.l.b16 %v1397
        %v1434 = vunpack.c.l.b16 %v1398
        %v1435 = vunpack.c.l.b16 %v1399
        %v1436 = vunpack.c.l.b16 %v1400
        %v1437 = vunpack.c.l.b16 %v1401
        %v1438 = vunpack.c.l.b16 %v1402
        %v1439 = vunpack.c.l.b16 %v1403
        %v1440 = vunpack.c.l.b16 %v1404
        %v1441 = vunpack.c.l.b16 %v1405
        %v1442 = vunpack.c.l.b16 %v1406
        %v1443 = vpack.c.b16 %v1428, %v1427
        %v1444 = vpack.c.b16 %v1430, %v1429
        %v1445 = vpack.c.b16 %v1432, %v1431
        %v1446 = vpack.c.b16 %v1434, %v1433
        %v1447 = vpack.c.b16 %v1436, %v1435
        %v1448 = vpack.c.b16 %v1438, %v1437
        %v1449 = vpack.c.b16 %v1440, %v1439
        %v1450 = vpack.c.b16 %v1442, %v1441
        %1459 = vmatpush.bf16.msra.mxu0 %v1450
        %1460 = vmatpush.bf16.msra.mxu0 %v1449
        %1461 = vmatpush.bf16.msra.mxu0 %v1448
        %1462 = vmatpush.bf16.msra.mxu0 %v1447
        %1463 = vmatpush.bf16.msra.mxu0 %v1446
        %1464 = vmatpush.bf16.msra.mxu0 %v1445
        %1465 = vmatpush.bf16.msra.mxu0 %v1444
        %1466 = vmatpush.bf16.msra.mxu0 %v1443
        %1467 = vmatmul.bf16.gmra.mxu0 %v1389
        %v1468 = vpop.f32.mrf.mxu0
        %v1469 = vadd.f32 %v1409, %v1468
        %v1470 = vpop.f32.mrf.mxu0
        %v1471 = vadd.f32 %v1409, %v1470
        %1472 = vmatmul.bf16.gmra.mxu0 %v1390
        %v1473 = vpop.f32.mrf.mxu0
        %v1474 = vadd.f32 %v1409, %v1473
        %v1475 = vpop.f32.mrf.mxu0
        %v1476 = vadd.f32 %v1409, %v1475
        %1477 = vdwg.mxu0
        %v1478 = vadd.f32 %v530, %v1469
        %v1479 = vadd.f32 %v531, %v1471
        %v1480 = vadd.f32 %v532, %v1474
        %v1481 = vadd.f32 %v533, %v1476
        %v1482 = vld [vmem:[#allocation8] sm:$0x1]
        %v1483 = vld [vmem:[#allocation10] sm:$0x1]
        %1484 = vadd.xlane.f32.xlu0 %v1478
        %v1485 = vpop.xlane.xlu0 %1484
        %1486 = vadd.xlane.f32.xlu0 %v1479
        %v1487 = vpop.xlane.xlu0 %1486
        %1488 = vadd.xlane.f32.xlu0 %v1480
        %v1489 = vpop.xlane.xlu0 %1488
        %1490 = vadd.xlane.f32.xlu0 %v1481
        %v1491 = vpop.xlane.xlu0 %1490
        %v1492 = vmul.f32 %v1485, %v550
        %v1493 = vmul.f32 %v1487, %v550
        %v1494 = vmul.f32 %v1489, %v550
        %v1495 = vmul.f32 %v1491, %v550
        %v1496 = vmul.f32 %v1478, %v1478
        %v1497 = vmul.f32 %v1479, %v1479
        %v1498 = vmul.f32 %v1480, %v1480
        %v1499 = vmul.f32 %v1481, %v1481
        %1500 = vadd.xlane.f32.xlu0 %v1496
        %v1501 = vpop.xlane.xlu0 %1500
        %1502 = vadd.xlane.f32.xlu0 %v1497
        %v1503 = vpop.xlane.xlu0 %1502
        %1504 = vadd.xlane.f32.xlu0 %v1498
        %v1505 = vpop.xlane.xlu0 %1504
        %1506 = vadd.xlane.f32.xlu0 %v1499
        %v1507 = vpop.xlane.xlu0 %1506
        %v1508 = vmul.f32 %v1501, %v550
        %v1509 = vmul.f32 %v1503, %v550
        %v1510 = vmul.f32 %v1505, %v550
        %v1511 = vmul.f32 %v1507, %v550
        %v1512 = vmul.f32 %v1492, %v1492
        %v1513 = vmul.f32 %v1493, %v1493
        %v1514 = vmul.f32 %v1494, %v1494
        %v1515 = vmul.f32 %v1495, %v1495
        %v1516 = vsub.f32 %v1508, %v1512
        %v1517 = vsub.f32 %v1509, %v1513
        %v1518 = vsub.f32 %v1510, %v1514
        %v1519 = vsub.f32 %v1511, %v1515
        %v1520 = vsub.f32 %v1478, %v1492
        %v1521 = vsub.f32 %v1479, %v1493
        %v1522 = vsub.f32 %v1480, %v1494
        %v1523 = vsub.f32 %v1481, %v1495
        %v1524 = vadd.f32 %v1516, 1e-06
        %v1525 = vadd.f32 %v1517, 1e-06
        %v1526 = vadd.f32 %v1518, 1e-06
        %v1527 = vadd.f32 %v1519, 1e-06
        %v1528 = vrsqrt.pop %v1524
        %v1529 = vmul.f32 %v1528, %v1524
        %v1530 = vmul.f32 %v1529, %v1528
        %v1531 = vmul.f32 0.5, %v1530
        %v1532 = vsub.f32 1.5, %v1531
        %v1533 = vmul.f32 %v1528, %v1532
        %vm1534 = vweird.f32 %v1524
        %vm1535 = vweird.f32 %v1528
        %vm1536 = vmor %vm1534, %vm1535
        %v1537 = vsel %vm1536, %v1528, %v1533
        %v1538 = vrsqrt.pop %v1525
        %v1539 = vmul.f32 %v1538, %v1525
        %v1540 = vmul.f32 %v1539, %v1538
        %v1541 = vmul.f32 0.5, %v1540
        %v1542 = vsub.f32 1.5, %v1541
        %v1543 = vmul.f32 %v1538, %v1542
        %vm1544 = vweird.f32 %v1525
        %vm1545 = vweird.f32 %v1538
        %vm1546 = vmor %vm1544, %vm1545
        %v1547 = vsel %vm1546, %v1538, %v1543
        %v1548 = vrsqrt.pop %v1526
        %v1549 = vmul.f32 %v1548, %v1526
        %v1550 = vmul.f32 %v1549, %v1548
        %v1551 = vmul.f32 0.5, %v1550
        %v1552 = vsub.f32 1.5, %v1551
        %v1553 = vmul.f32 %v1548, %v1552
        %vm1554 = vweird.f32 %v1526
        %vm1555 = vweird.f32 %v1548
        %vm1556 = vmor %vm1554, %vm1555
        %v1557 = vsel %vm1556, %v1548, %v1553
        %v1558 = vrsqrt.pop %v1527
        %v1559 = vmul.f32 %v1558, %v1527
        %v1560 = vmul.f32 %v1559, %v1558
        %v1561 = vmul.f32 0.5, %v1560
        %v1562 = vsub.f32 1.5, %v1561
        %v1563 = vmul.f32 %v1558, %v1562
        %vm1564 = vweird.f32 %v1527
        %vm1565 = vweird.f32 %v1558
        %vm1566 = vmor %vm1564, %vm1565
        %v1567 = vsel %vm1566, %v1558, %v1563
        %v1568 = vmul.f32 %v1520, %v1537
        %v1569 = vmul.f32 %v1521, %v1547
        %v1570 = vmul.f32 %v1522, %v1557
        %v1571 = vmul.f32 %v1523, %v1567
        %v1573 = vperm.slane %v1482, 0
        %v1575 = vmul.f32 %v1568, %v1573
        %v1576 = vmul.f32 %v1569, %v1573
        %v1577 = vmul.f32 %v1570, %v1573
        %v1578 = vmul.f32 %v1571, %v1573
        %v1580 = vperm.slane %v1483, 0
        %v1582 = vadd.f32 %v1575, %v1580
        %v1583 = vadd.f32 %v1576, %v1580
        %v1584 = vadd.f32 %v1577, %v1580
        %v1585 = vadd.f32 %v1578, %v1580
        %v1586 = vpack.c.bf16 %v1583, %v1582
        %v1587 = vpack.c.bf16 %v1585, %v1584
        %v1588 = vld [vmem:[#allocation11] sm:$0xff]
        %v1589 = vld [vmem:[#allocation11 + $0x8] sm:$0xff]
        %v1590 = vld [vmem:[#allocation11 + $0x10] sm:$0xff]
        %v1591 = vld [vmem:[#allocation11 + $0x18] sm:$0xff]
        %v1592 = vld [vmem:[#allocation11 + $0x20] sm:$0xff]
        %v1593 = vld [vmem:[#allocation11 + $0x28] sm:$0xff]
        %v1594 = vld [vmem:[#allocation11 + $0x30] sm:$0xff]
        %v1595 = vld [vmem:[#allocation11 + $0x38] sm:$0xff]
        %v1596 = vld [vmem:[#allocation11 + $0x40] sm:$0xff]
        %v1597 = vld [vmem:[#allocation11 + $0x48] sm:$0xff]
        %v1598 = vld [vmem:[#allocation11 + $0x50] sm:$0xff]
        %v1599 = vld [vmem:[#allocation11 + $0x58] sm:$0xff]
        %v1600 = vld [vmem:[#allocation11 + $0x60] sm:$0xff]
        %v1601 = vld [vmem:[#allocation11 + $0x68] sm:$0xff]
        %v1602 = vld [vmem:[#allocation11 + $0x70] sm:$0xff]
        %v1603 = vld [vmem:[#allocation11 + $0x78] sm:$0xff]
        %v1604 = vld [vmem:[#allocation11 + $0x80] sm:$0xff]
        %v1605 = vld [vmem:[#allocation11 + $0x88] sm:$0xff]
        %v1606 = vld [vmem:[#allocation11 + $0x90] sm:$0xff]
        %v1607 = vld [vmem:[#allocation11 + $0x98] sm:$0xff]
        %v1608 = vld [vmem:[#allocation11 + $0xa0] sm:$0xff]
        %v1609 = vld [vmem:[#allocation11 + $0xa8] sm:$0xff]
        %v1610 = vld [vmem:[#allocation11 + $0xb0] sm:$0xff]
        %v1611 = vld [vmem:[#allocation11 + $0xb8] sm:$0xff]
        %v1612 = vld [vmem:[#allocation11 + $0xc0] sm:$0xff]
        %v1613 = vld [vmem:[#allocation11 + $0xc8] sm:$0xff]
        %v1614 = vld [vmem:[#allocation11 + $0xd0] sm:$0xff]
        %v1615 = vld [vmem:[#allocation11 + $0xd8] sm:$0xff]
        %v1616 = vld [vmem:[#allocation11 + $0xe0] sm:$0xff]
        %v1617 = vld [vmem:[#allocation11 + $0xe8] sm:$0xff]
        %v1618 = vld [vmem:[#allocation11 + $0xf0] sm:$0xff]
        %v1619 = vld [vmem:[#allocation11 + $0xf8] sm:$0xff]
        %v1620 = vld [vmem:[%s9] sm:$0xf]
        %v1622 = vperm.slane %v1620, 0
        %v1623 = vperm.slane %v1620, 1
        %v1624 = vperm.slane %v1620, 2
        %v1625 = vperm.slane %v1620, 3
        %v1662 = vunpack.c.l.b16 %v1588
        %v1663 = vunpack.c.h.b16 %v1588
        %v1664 = vunpack.c.l.b16 %v1589
        %v1665 = vunpack.c.h.b16 %v1589
        %v1666 = vunpack.c.l.b16 %v1590
        %v1667 = vunpack.c.h.b16 %v1590
        %v1668 = vunpack.c.l.b16 %v1591
        %v1669 = vunpack.c.h.b16 %v1591
        %v1670 = vunpack.c.l.b16 %v1592
        %v1671 = vunpack.c.h.b16 %v1592
        %v1672 = vunpack.c.l.b16 %v1593
        %v1673 = vunpack.c.h.b16 %v1593
        %v1674 = vunpack.c.l.b16 %v1594
        %v1675 = vunpack.c.h.b16 %v1594
        %v1676 = vunpack.c.l.b16 %v1595
        %v1677 = vunpack.c.h.b16 %v1595
        %v1678 = vunpack.c.l.b16 %v1596
        %v1679 = vunpack.c.h.b16 %v1596
        %v1680 = vunpack.c.l.b16 %v1597
        %v1681 = vunpack.c.h.b16 %v1597
        %v1682 = vunpack.c.l.b16 %v1598
        %v1683 = vunpack.c.h.b16 %v1598
        %v1684 = vunpack.c.l.b16 %v1599
        %v1685 = vunpack.c.h.b16 %v1599
        %v1686 = vunpack.c.l.b16 %v1600
        %v1687 = vunpack.c.h.b16 %v1600
        %v1688 = vunpack.c.l.b16 %v1601
        %v1689 = vunpack.c.h.b16 %v1601
        %v1690 = vunpack.c.l.b16 %v1602
        %v1691 = vunpack.c.h.b16 %v1602
        %v1692 = vunpack.c.l.b16 %v1603
        %v1693 = vunpack.c.h.b16 %v1603
        %v1694 = vunpack.c.l.b16 %v1604
        %v1695 = vunpack.c.h.b16 %v1604
        %v1696 = vunpack.c.l.b16 %v1605
        %v1697 = vunpack.c.h.b16 %v1605
        %v1698 = vunpack.c.l.b16 %v1606
        %v1699 = vunpack.c.h.b16 %v1606
        %v1700 = vunpack.c.l.b16 %v1607
        %v1701 = vunpack.c.h.b16 %v1607
        %v1702 = vunpack.c.l.b16 %v1608
        %v1703 = vunpack.c.h.b16 %v1608
        %v1704 = vunpack.c.l.b16 %v1609
        %v1705 = vunpack.c.h.b16 %v1609
        %v1706 = vunpack.c.l.b16 %v1610
        %v1707 = vunpack.c.h.b16 %v1610
        %v1708 = vunpack.c.l.b16 %v1611
        %v1709 = vunpack.c.h.b16 %v1611
        %v1710 = vunpack.c.l.b16 %v1612
        %v1711 = vunpack.c.h.b16 %v1612
        %v1712 = vunpack.c.l.b16 %v1613
        %v1713 = vunpack.c.h.b16 %v1613
        %v1714 = vunpack.c.l.b16 %v1614
        %v1715 = vunpack.c.h.b16 %v1614
        %v1716 = vunpack.c.l.b16 %v1615
        %v1717 = vunpack.c.h.b16 %v1615
        %v1718 = vunpack.c.l.b16 %v1616
        %v1719 = vunpack.c.h.b16 %v1616
        %v1720 = vunpack.c.l.b16 %v1617
        %v1721 = vunpack.c.h.b16 %v1617
        %v1722 = vunpack.c.l.b16 %v1618
        %v1723 = vunpack.c.h.b16 %v1618
        %v1724 = vunpack.c.l.b16 %v1619
        %v1725 = vunpack.c.h.b16 %v1619
        %v1726 = vpack.c.b16 %v1666, %v1662
        %v1727 = vpack.c.b16 %v1667, %v1663
        %v1728 = vpack.c.b16 %v1668, %v1664
        %v1729 = vpack.c.b16 %v1669, %v1665
        %v1730 = vpack.c.b16 %v1674, %v1670
        %v1731 = vpack.c.b16 %v1675, %v1671
        %v1732 = vpack.c.b16 %v1676, %v1672
        %v1733 = vpack.c.b16 %v1677, %v1673
        %v1734 = vpack.c.b16 %v1682, %v1678
        %v1735 = vpack.c.b16 %v1683, %v1679
        %v1736 = vpack.c.b16 %v1684, %v1680
        %v1737 = vpack.c.b16 %v1685, %v1681
        %v1738 = vpack.c.b16 %v1690, %v1686
        %v1739 = vpack.c.b16 %v1691, %v1687
        %v1740 = vpack.c.b16 %v1692, %v1688
        %v1741 = vpack.c.b16 %v1693, %v1689
        %v1742 = vpack.c.b16 %v1698, %v1694
        %v1743 = vpack.c.b16 %v1699, %v1695
        %v1744 = vpack.c.b16 %v1700, %v1696
        %v1745 = vpack.c.b16 %v1701, %v1697
        %v1746 = vpack.c.b16 %v1706, %v1702
        %v1747 = vpack.c.b16 %v1707, %v1703
        %v1748 = vpack.c.b16 %v1708, %v1704
        %v1749 = vpack.c.b16 %v1709, %v1705
        %v1750 = vpack.c.b16 %v1714, %v1710
        %v1751 = vpack.c.b16 %v1715, %v1711
        %v1752 = vpack.c.b16 %v1716, %v1712
        %v1753 = vpack.c.b16 %v1717, %v1713
        %v1754 = vpack.c.b16 %v1722, %v1718
        %v1755 = vpack.c.b16 %v1723, %v1719
        %v1756 = vpack.c.b16 %v1724, %v1720
        %v1757 = vpack.c.b16 %v1725, %v1721
        %1790 = vmatpush.bf16.msra.mxu0 %v1754
        %1791 = vmatpush.bf16.msra.mxu0 %v1750
        %1792 = vmatpush.bf16.msra.mxu0 %v1746
        %1793 = vmatpush.bf16.msra.mxu0 %v1742
        %1794 = vmatpush.bf16.msra.mxu0 %v1738
        %1795 = vmatpush.bf16.msra.mxu0 %v1734
        %1796 = vmatpush.bf16.msra.mxu0 %v1730
        %1797 = vmatpush.bf16.msra.mxu0 %v1726
        %1798 = vmatmul.bf16.gmra.mxu0 %v1586
        %v1799 = vpop.f32.mrf.mxu0
        %v1800 = vadd.f32 %v1622, %v1799
        %v1801 = vpop.f32.mrf.mxu0
        %v1802 = vadd.f32 %v1622, %v1801
        %1803 = vmatmul.bf16.gmra.mxu0 %v1587
        %v1804 = vpop.f32.mrf.mxu0
        %v1805 = vadd.f32 %v1622, %v1804
        %v1806 = vpop.f32.mrf.mxu0
        %v1807 = vadd.f32 %v1622, %v1806
        %1808 = vdwg.mxu0
        %1809 = vmatpush.bf16.msra.mxu0 %v1755
        %1810 = vmatpush.bf16.msra.mxu0 %v1751
        %1811 = vmatpush.bf16.msra.mxu0 %v1747
        %1812 = vmatpush.bf16.msra.mxu0 %v1743
        %1813 = vmatpush.bf16.msra.mxu0 %v1739
        %1814 = vmatpush.bf16.msra.mxu0 %v1735
        %1815 = vmatpush.bf16.msra.mxu0 %v1731
        %1816 = vmatpush.bf16.msra.mxu0 %v1727
        %1817 = vmatmul.bf16.gmra.mxu0 %v1586
        %v1818 = vpop.f32.mrf.mxu0
        %v1819 = vadd.f32 %v1623, %v1818
        %v1820 = vpop.f32.mrf.mxu0
        %v1821 = vadd.f32 %v1623, %v1820
        %1822 = vmatmul.bf16.gmra.mxu0 %v1587
        %v1823 = vpop.f32.mrf.mxu0
        %v1824 = vadd.f32 %v1623, %v1823
        %v1825 = vpop.f32.mrf.mxu0
        %v1826 = vadd.f32 %v1623, %v1825
        %1827 = vdwg.mxu0
        %1828 = vmatpush.bf16.msra.mxu0 %v1756
        %1829 = vmatpush.bf16.msra.mxu0 %v1752
        %1830 = vmatpush.bf16.msra.mxu0 %v1748
        %1831 = vmatpush.bf16.msra.mxu0 %v1744
        %1832 = vmatpush.bf16.msra.mxu0 %v1740
        %1833 = vmatpush.bf16.msra.mxu0 %v1736
        %1834 = vmatpush.bf16.msra.mxu0 %v1732
        %1835 = vmatpush.bf16.msra.mxu0 %v1728
        %1836 = vmatmul.bf16.gmra.mxu0 %v1586
        %v1837 = vpop.f32.mrf.mxu0
        %v1838 = vadd.f32 %v1624, %v1837
        %v1839 = vpop.f32.mrf.mxu0
        %v1840 = vadd.f32 %v1624, %v1839
        %1841 = vmatmul.bf16.gmra.mxu0 %v1587
        %v1842 = vpop.f32.mrf.mxu0
        %v1843 = vadd.f32 %v1624, %v1842
        %v1844 = vpop.f32.mrf.mxu0
        %v1845 = vadd.f32 %v1624, %v1844
        %1846 = vdwg.mxu0
        %1847 = vmatpush.bf16.msra.mxu0 %v1757
        %1848 = vmatpush.bf16.msra.mxu0 %v1753
        %1849 = vmatpush.bf16.msra.mxu0 %v1749
        %1850 = vmatpush.bf16.msra.mxu0 %v1745
        %1851 = vmatpush.bf16.msra.mxu0 %v1741
        %1852 = vmatpush.bf16.msra.mxu0 %v1737
        %1853 = vmatpush.bf16.msra.mxu0 %v1733
        %1854 = vmatpush.bf16.msra.mxu0 %v1729
        %1855 = vmatmul.bf16.gmra.mxu0 %v1586
        %v1856 = vpop.f32.mrf.mxu0
        %v1857 = vadd.f32 %v1625, %v1856
        %v1858 = vpop.f32.mrf.mxu0
        %v1859 = vadd.f32 %v1625, %v1858
        %1860 = vmatmul.bf16.gmra.mxu0 %v1587
        %v1861 = vpop.f32.mrf.mxu0
        %v1862 = vadd.f32 %v1625, %v1861
        %v1863 = vpop.f32.mrf.mxu0
        %v1864 = vadd.f32 %v1625, %v1863
        %1865 = vdwg.mxu0
        %v1866 = vmul.f32 %v1800, %v1800
        %v1867 = vmul.f32 %v1819, %v1819
        %v1868 = vmul.f32 %v1838, %v1838
        %v1869 = vmul.f32 %v1857, %v1857
        %v1870 = vmul.f32 %v1802, %v1802
        %v1871 = vmul.f32 %v1821, %v1821
        %v1872 = vmul.f32 %v1840, %v1840
        %v1873 = vmul.f32 %v1859, %v1859
        %v1874 = vmul.f32 %v1805, %v1805
        %v1875 = vmul.f32 %v1824, %v1824
        %v1876 = vmul.f32 %v1843, %v1843
        %v1877 = vmul.f32 %v1862, %v1862
        %v1878 = vmul.f32 %v1807, %v1807
        %v1879 = vmul.f32 %v1826, %v1826
        %v1880 = vmul.f32 %v1845, %v1845
        %v1881 = vmul.f32 %v1864, %v1864
        %v1882 = vmul.f32 %v1800, %v1866
        %v1883 = vmul.f32 %v1819, %v1867
        %v1884 = vmul.f32 %v1838, %v1868
        %v1885 = vmul.f32 %v1857, %v1869
        %v1886 = vmul.f32 %v1802, %v1870
        %v1887 = vmul.f32 %v1821, %v1871
        %v1888 = vmul.f32 %v1840, %v1872
        %v1889 = vmul.f32 %v1859, %v1873
        %v1890 = vmul.f32 %v1805, %v1874
        %v1891 = vmul.f32 %v1824, %v1875
        %v1892 = vmul.f32 %v1843, %v1876
        %v1893 = vmul.f32 %v1862, %v1877
        %v1894 = vmul.f32 %v1807, %v1878
        %v1895 = vmul.f32 %v1826, %v1879
        %v1896 = vmul.f32 %v1845, %v1880
        %v1897 = vmul.f32 %v1864, %v1881
        %v1898 = vmul.f32 %v1882, 0.044715
        %v1899 = vmul.f32 %v1883, 0.044715
        %v1900 = vmul.f32 %v1884, 0.044715
        %v1901 = vmul.f32 %v1885, 0.044715
        %v1902 = vmul.f32 %v1886, 0.044715
        %v1903 = vmul.f32 %v1887, 0.044715
        %v1904 = vmul.f32 %v1888, 0.044715
        %v1905 = vmul.f32 %v1889, 0.044715
        %v1906 = vmul.f32 %v1890, 0.044715
        %v1907 = vmul.f32 %v1891, 0.044715
        %v1908 = vmul.f32 %v1892, 0.044715
        %v1909 = vmul.f32 %v1893, 0.044715
        %v1910 = vmul.f32 %v1894, 0.044715
        %v1911 = vmul.f32 %v1895, 0.044715
        %v1912 = vmul.f32 %v1896, 0.044715
        %v1913 = vmul.f32 %v1897, 0.044715
        %v1914 = vadd.f32 %v1800, %v1898
        %v1915 = vadd.f32 %v1819, %v1899
        %v1916 = vadd.f32 %v1838, %v1900
        %v1917 = vadd.f32 %v1857, %v1901
        %v1918 = vadd.f32 %v1802, %v1902
        %v1919 = vadd.f32 %v1821, %v1903
        %v1920 = vadd.f32 %v1840, %v1904
        %v1921 = vadd.f32 %v1859, %v1905
        %v1922 = vadd.f32 %v1805, %v1906
        %v1923 = vadd.f32 %v1824, %v1907
        %v1924 = vadd.f32 %v1843, %v1908
        %v1925 = vadd.f32 %v1862, %v1909
        %v1926 = vadd.f32 %v1807, %v1910
        %v1927 = vadd.f32 %v1826, %v1911
        %v1928 = vadd.f32 %v1845, %v1912
        %v1929 = vadd.f32 %v1864, %v1913
        %v1930 = vmul.f32 %v1914, 0.7978846
        %v1931 = vmul.f32 %v1915, 0.7978846
        %v1932 = vmul.f32 %v1916, 0.7978846
        %v1933 = vmul.f32 %v1917, 0.7978846
        %v1934 = vmul.f32 %v1918, 0.7978846
        %v1935 = vmul.f32 %v1919, 0.7978846
        %v1936 = vmul.f32 %v1920, 0.7978846
        %v1937 = vmul.f32 %v1921, 0.7978846
        %v1938 = vmul.f32 %v1922, 0.7978846
        %v1939 = vmul.f32 %v1923, 0.7978846
        %v1940 = vmul.f32 %v1924, 0.7978846
        %v1941 = vmul.f32 %v1925, 0.7978846
        %v1942 = vmul.f32 %v1926, 0.7978846
        %v1943 = vmul.f32 %v1927, 0.7978846
        %v1944 = vmul.f32 %v1928, 0.7978846
        %v1945 = vmul.f32 %v1929, 0.7978846
        %v1946 = vtanh.pop %v1930
        %v1947 = vtanh.pop %v1931
        %v1948 = vtanh.pop %v1932
        %v1949 = vtanh.pop %v1933
        %v1950 = vtanh.pop %v1934
        %v1951 = vtanh.pop %v1935
        %v1952 = vtanh.pop %v1936
        %v1953 = vtanh.pop %v1937
        %v1954 = vtanh.pop %v1938
        %v1955 = vtanh.pop %v1939
        %v1956 = vtanh.pop %v1940
        %v1957 = vtanh.pop %v1941
        %v1958 = vtanh.pop %v1942
        %v1959 = vtanh.pop %v1943
        %v1960 = vtanh.pop %v1944
        %v1961 = vtanh.pop %v1945
        %v1962 = vadd.f32 %v1946, 1.0
        %v1963 = vadd.f32 %v1947, 1.0
        %v1964 = vadd.f32 %v1948, 1.0
        %v1965 = vadd.f32 %v1949, 1.0
        %v1966 = vadd.f32 %v1950, 1.0
        %v1967 = vadd.f32 %v1951, 1.0
        %v1968 = vadd.f32 %v1952, 1.0
        %v1969 = vadd.f32 %v1953, 1.0
        %v1970 = vadd.f32 %v1954, 1.0
        %v1971 = vadd.f32 %v1955, 1.0
        %v1972 = vadd.f32 %v1956, 1.0
        %v1973 = vadd.f32 %v1957, 1.0
        %v1974 = vadd.f32 %v1958, 1.0
        %v1975 = vadd.f32 %v1959, 1.0
        %v1976 = vadd.f32 %v1960, 1.0
        %v1977 = vadd.f32 %v1961, 1.0
        %v1978 = vmul.f32 %v1962, 0.5
        %v1979 = vmul.f32 %v1963, 0.5
        %v1980 = vmul.f32 %v1964, 0.5
        %v1981 = vmul.f32 %v1965, 0.5
        %v1982 = vmul.f32 %v1966, 0.5
        %v1983 = vmul.f32 %v1967, 0.5
        %v1984 = vmul.f32 %v1968, 0.5
        %v1985 = vmul.f32 %v1969, 0.5
        %v1986 = vmul.f32 %v1970, 0.5
        %v1987 = vmul.f32 %v1971, 0.5
        %v1988 = vmul.f32 %v1972, 0.5
        %v1989 = vmul.f32 %v1973, 0.5
        %v1990 = vmul.f32 %v1974, 0.5
        %v1991 = vmul.f32 %v1975, 0.5
        %v1992 = vmul.f32 %v1976, 0.5
        %v1993 = vmul.f32 %v1977, 0.5
        %v1994 = vmul.f32 %v1800, %v1978
        %v1995 = vmul.f32 %v1819, %v1979
        %v1996 = vmul.f32 %v1838, %v1980
        %v1997 = vmul.f32 %v1857, %v1981
        %v1998 = vmul.f32 %v1802, %v1982
        %v1999 = vmul.f32 %v1821, %v1983
        %v2000 = vmul.f32 %v1840, %v1984
        %v2001 = vmul.f32 %v1859, %v1985
        %v2002 = vmul.f32 %v1805, %v1986
        %v2003 = vmul.f32 %v1824, %v1987
        %v2004 = vmul.f32 %v1843, %v1988
        %v2005 = vmul.f32 %v1862, %v1989
        %v2006 = vmul.f32 %v1807, %v1990
        %v2007 = vmul.f32 %v1826, %v1991
        %v2008 = vmul.f32 %v1845, %v1992
        %v2009 = vmul.f32 %v1864, %v1993
        %v2010 = vpack.c.bf16 %v1998, %v1994
        %v2011 = vpack.c.bf16 %v1999, %v1995
        %v2012 = vpack.c.bf16 %v2000, %v1996
        %v2013 = vpack.c.bf16 %v2001, %v1997
        %v2014 = vpack.c.bf16 %v2006, %v2002
        %v2015 = vpack.c.bf16 %v2007, %v2003
        %v2016 = vpack.c.bf16 %v2008, %v2004
        %v2017 = vpack.c.bf16 %v2009, %v2005
        %v2018 = vld [vmem:[#allocation13] sm:$0xf]
        %v2019 = vld [vmem:[#allocation13 + $0x4] sm:$0xf]
        %v2020 = vld [vmem:[#allocation13 + $0x8] sm:$0xf]
        %v2021 = vld [vmem:[#allocation13 + $0xc] sm:$0xf]
        %v2022 = vld [vmem:[#allocation13 + $0x10] sm:$0xf]
        %v2023 = vld [vmem:[#allocation13 + $0x14] sm:$0xf]
        %v2024 = vld [vmem:[#allocation13 + $0x18] sm:$0xf]
        %v2025 = vld [vmem:[#allocation13 + $0x1c] sm:$0xf]
        %v2026 = vld [vmem:[#allocation13 + $0x20] sm:$0xf]
        %v2027 = vld [vmem:[#allocation13 + $0x24] sm:$0xf]
        %v2028 = vld [vmem:[#allocation13 + $0x28] sm:$0xf]
        %v2029 = vld [vmem:[#allocation13 + $0x2c] sm:$0xf]
        %v2030 = vld [vmem:[#allocation13 + $0x30] sm:$0xf]
        %v2031 = vld [vmem:[#allocation13 + $0x34] sm:$0xf]
        %v2032 = vld [vmem:[#allocation13 + $0x38] sm:$0xf]
        %v2033 = vld [vmem:[#allocation13 + $0x3c] sm:$0xf]
        %v2034 = vld [vmem:[#allocation13 + $0x40] sm:$0xf]
        %v2035 = vld [vmem:[#allocation13 + $0x44] sm:$0xf]
        %v2036 = vld [vmem:[#allocation13 + $0x48] sm:$0xf]
        %v2037 = vld [vmem:[#allocation13 + $0x4c] sm:$0xf]
        %v2038 = vld [vmem:[#allocation13 + $0x50] sm:$0xf]
        %v2039 = vld [vmem:[#allocation13 + $0x54] sm:$0xf]
        %v2040 = vld [vmem:[#allocation13 + $0x58] sm:$0xf]
        %v2041 = vld [vmem:[#allocation13 + $0x5c] sm:$0xf]
        %v2042 = vld [vmem:[#allocation13 + $0x60] sm:$0xf]
        %v2043 = vld [vmem:[#allocation13 + $0x64] sm:$0xf]
        %v2044 = vld [vmem:[#allocation13 + $0x68] sm:$0xf]
        %v2045 = vld [vmem:[#allocation13 + $0x6c] sm:$0xf]
        %v2046 = vld [vmem:[#allocation13 + $0x70] sm:$0xf]
        %v2047 = vld [vmem:[#allocation13 + $0x74] sm:$0xf]
        %v2048 = vld [vmem:[#allocation13 + $0x78] sm:$0xf]
        %v2049 = vld [vmem:[#allocation13 + $0x7c] sm:$0xf]
        %v2050 = vld [vmem:[#allocation13 + $0x80] sm:$0xf]
        %v2051 = vld [vmem:[#allocation13 + $0x84] sm:$0xf]
        %v2052 = vld [vmem:[#allocation13 + $0x88] sm:$0xf]
        %v2053 = vld [vmem:[#allocation13 + $0x8c] sm:$0xf]
        %v2054 = vld [vmem:[#allocation13 + $0x90] sm:$0xf]
        %v2055 = vld [vmem:[#allocation13 + $0x94] sm:$0xf]
        %v2056 = vld [vmem:[#allocation13 + $0x98] sm:$0xf]
        %v2057 = vld [vmem:[#allocation13 + $0x9c] sm:$0xf]
        %v2058 = vld [vmem:[#allocation13 + $0xa0] sm:$0xf]
        %v2059 = vld [vmem:[#allocation13 + $0xa4] sm:$0xf]
        %v2060 = vld [vmem:[#allocation13 + $0xa8] sm:$0xf]
        %v2061 = vld [vmem:[#allocation13 + $0xac] sm:$0xf]
        %v2062 = vld [vmem:[#allocation13 + $0xb0] sm:$0xf]
        %v2063 = vld [vmem:[#allocation13 + $0xb4] sm:$0xf]
        %v2064 = vld [vmem:[#allocation13 + $0xb8] sm:$0xf]
        %v2065 = vld [vmem:[#allocation13 + $0xbc] sm:$0xf]
        %v2066 = vld [vmem:[#allocation13 + $0xc0] sm:$0xf]
        %v2067 = vld [vmem:[#allocation13 + $0xc4] sm:$0xf]
        %v2068 = vld [vmem:[#allocation13 + $0xc8] sm:$0xf]
        %v2069 = vld [vmem:[#allocation13 + $0xcc] sm:$0xf]
        %v2070 = vld [vmem:[#allocation13 + $0xd0] sm:$0xf]
        %v2071 = vld [vmem:[#allocation13 + $0xd4] sm:$0xf]
        %v2072 = vld [vmem:[#allocation13 + $0xd8] sm:$0xf]
        %v2073 = vld [vmem:[#allocation13 + $0xdc] sm:$0xf]
        %v2074 = vld [vmem:[#allocation13 + $0xe0] sm:$0xf]
        %v2075 = vld [vmem:[#allocation13 + $0xe4] sm:$0xf]
        %v2076 = vld [vmem:[#allocation13 + $0xe8] sm:$0xf]
        %v2077 = vld [vmem:[#allocation13 + $0xec] sm:$0xf]
        %v2078 = vld [vmem:[#allocation13 + $0xf0] sm:$0xf]
        %v2079 = vld [vmem:[#allocation13 + $0xf4] sm:$0xf]
        %v2080 = vld [vmem:[#allocation13 + $0xf8] sm:$0xf]
        %v2081 = vld [vmem:[#allocation13 + $0xfc] sm:$0xf]
        %v2082 = vld [vmem:[%s11] sm:$0x1]
        %v2084 = vperm.slane %v2082, 0
        %v2150 = vunpack.c.l.b16 %v2018
        %v2151 = vunpack.c.l.b16 %v2019
        %v2152 = vunpack.c.l.b16 %v2020
        %v2153 = vunpack.c.l.b16 %v2021
        %v2154 = vunpack.c.l.b16 %v2022
        %v2155 = vunpack.c.l.b16 %v2023
        %v2156 = vunpack.c.l.b16 %v2024
        %v2157 = vunpack.c.l.b16 %v2025
        %v2158 = vunpack.c.l.b16 %v2026
        %v2159 = vunpack.c.l.b16 %v2027
        %v2160 = vunpack.c.l.b16 %v2028
        %v2161 = vunpack.c.l.b16 %v2029
        %v2162 = vunpack.c.l.b16 %v2030
        %v2163 = vunpack.c.l.b16 %v2031
        %v2164 = vunpack.c.l.b16 %v2032
        %v2165 = vunpack.c.l.b16 %v2033
        %v2166 = vunpack.c.l.b16 %v2034
        %v2167 = vunpack.c.l.b16 %v2035
        %v2168 = vunpack.c.l.b16 %v2036
        %v2169 = vunpack.c.l.b16 %v2037
        %v2170 = vunpack.c.l.b16 %v2038
        %v2171 = vunpack.c.l.b16 %v2039
        %v2172 = vunpack.c.l.b16 %v2040
        %v2173 = vunpack.c.l.b16 %v2041
        %v2174 = vunpack.c.l.b16 %v2042
        %v2175 = vunpack.c.l.b16 %v2043
        %v2176 = vunpack.c.l.b16 %v2044
        %v2177 = vunpack.c.l.b16 %v2045
        %v2178 = vunpack.c.l.b16 %v2046
        %v2179 = vunpack.c.l.b16 %v2047
        %v2180 = vunpack.c.l.b16 %v2048
        %v2181 = vunpack.c.l.b16 %v2049
        %v2182 = vunpack.c.l.b16 %v2050
        %v2183 = vunpack.c.l.b16 %v2051
        %v2184 = vunpack.c.l.b16 %v2052
        %v2185 = vunpack.c.l.b16 %v2053
        %v2186 = vunpack.c.l.b16 %v2054
        %v2187 = vunpack.c.l.b16 %v2055
        %v2188 = vunpack.c.l.b16 %v2056
        %v2189 = vunpack.c.l.b16 %v2057
        %v2190 = vunpack.c.l.b16 %v2058
        %v2191 = vunpack.c.l.b16 %v2059
        %v2192 = vunpack.c.l.b16 %v2060
        %v2193 = vunpack.c.l.b16 %v2061
        %v2194 = vunpack.c.l.b16 %v2062
        %v2195 = vunpack.c.l.b16 %v2063
        %v2196 = vunpack.c.l.b16 %v2064
        %v2197 = vunpack.c.l.b16 %v2065
        %v2198 = vunpack.c.l.b16 %v2066
        %v2199 = vunpack.c.l.b16 %v2067
        %v2200 = vunpack.c.l.b16 %v2068
        %v2201 = vunpack.c.l.b16 %v2069
        %v2202 = vunpack.c.l.b16 %v2070
        %v2203 = vunpack.c.l.b16 %v2071
        %v2204 = vunpack.c.l.b16 %v2072
        %v2205 = vunpack.c.l.b16 %v2073
        %v2206 = vunpack.c.l.b16 %v2074
        %v2207 = vunpack.c.l.b16 %v2075
        %v2208 = vunpack.c.l.b16 %v2076
        %v2209 = vunpack.c.l.b16 %v2077
        %v2210 = vunpack.c.l.b16 %v2078
        %v2211 = vunpack.c.l.b16 %v2079
        %v2212 = vunpack.c.l.b16 %v2080
        %v2213 = vunpack.c.l.b16 %v2081
        %v2214 = vpack.c.b16 %v2151, %v2150
        %v2215 = vpack.c.b16 %v2153, %v2152
        %v2216 = vpack.c.b16 %v2155, %v2154
        %v2217 = vpack.c.b16 %v2157, %v2156
        %v2218 = vpack.c.b16 %v2159, %v2158
        %v2219 = vpack.c.b16 %v2161, %v2160
        %v2220 = vpack.c.b16 %v2163, %v2162
        %v2221 = vpack.c.b16 %v2165, %v2164
        %v2222 = vpack.c.b16 %v2167, %v2166
        %v2223 = vpack.c.b16 %v2169, %v2168
        %v2224 = vpack.c.b16 %v2171, %v2170
        %v2225 = vpack.c.b16 %v2173, %v2172
        %v2226 = vpack.c.b16 %v2175, %v2174
        %v2227 = vpack.c.b16 %v2177, %v2176
        %v2228 = vpack.c.b16 %v2179, %v2178
        %v2229 = vpack.c.b16 %v2181, %v2180
        %v2230 = vpack.c.b16 %v2183, %v2182
        %v2231 = vpack.c.b16 %v2185, %v2184
        %v2232 = vpack.c.b16 %v2187, %v2186
        %v2233 = vpack.c.b16 %v2189, %v2188
        %v2234 = vpack.c.b16 %v2191, %v2190
        %v2235 = vpack.c.b16 %v2193, %v2192
        %v2236 = vpack.c.b16 %v2195, %v2194
        %v2237 = vpack.c.b16 %v2197, %v2196
        %v2238 = vpack.c.b16 %v2199, %v2198
        %v2239 = vpack.c.b16 %v2201, %v2200
        %v2240 = vpack.c.b16 %v2203, %v2202
        %v2241 = vpack.c.b16 %v2205, %v2204
        %v2242 = vpack.c.b16 %v2207, %v2206
        %v2243 = vpack.c.b16 %v2209, %v2208
        %v2244 = vpack.c.b16 %v2211, %v2210
        %v2245 = vpack.c.b16 %v2213, %v2212
        %2278 = vmatpush.bf16.msra.mxu0 %v2221
        %2279 = vmatpush.bf16.msra.mxu0 %v2220
        %2280 = vmatpush.bf16.msra.mxu0 %v2219
        %2281 = vmatpush.bf16.msra.mxu0 %v2218
        %2282 = vmatpush.bf16.msra.mxu0 %v2217
        %2283 = vmatpush.bf16.msra.mxu0 %v2216
        %2284 = vmatpush.bf16.msra.mxu0 %v2215
        %2285 = vmatpush.bf16.msra.mxu0 %v2214
        %2286 = vmatmul.bf16.gmra.mxu0 %v2010
        %v2287 = vpop.f32.mrf.mxu0
        %v2288 = vadd.f32 %v2084, %v2287
        %v2289 = vpop.f32.mrf.mxu0
        %v2290 = vadd.f32 %v2084, %v2289
        %2291 = vmatmul.bf16.gmra.mxu0 %v2014
        %v2292 = vpop.f32.mrf.mxu0
        %v2293 = vadd.f32 %v2084, %v2292
        %v2294 = vpop.f32.mrf.mxu0
        %v2295 = vadd.f32 %v2084, %v2294
        %2296 = vdwg.mxu0
        %2297 = vmatpush.bf16.msra.mxu0 %v2229
        %2298 = vmatpush.bf16.msra.mxu0 %v2228
        %2299 = vmatpush.bf16.msra.mxu0 %v2227
        %2300 = vmatpush.bf16.msra.mxu0 %v2226
        %2301 = vmatpush.bf16.msra.mxu0 %v2225
        %2302 = vmatpush.bf16.msra.mxu0 %v2224
        %2303 = vmatpush.bf16.msra.mxu0 %v2223
        %2304 = vmatpush.bf16.msra.mxu0 %v2222
        %2305 = vmatmul.bf16.gmra.mxu0 %v2011
        %v2306 = vpop.f32.mrf.mxu0
        %v2307 = vadd.f32 %v2288, %v2306
        %v2308 = vpop.f32.mrf.mxu0
        %v2309 = vadd.f32 %v2290, %v2308
        %2310 = vmatmul.bf16.gmra.mxu0 %v2015
        %v2311 = vpop.f32.mrf.mxu0
        %v2312 = vadd.f32 %v2293, %v2311
        %v2313 = vpop.f32.mrf.mxu0
        %v2314 = vadd.f32 %v2295, %v2313
        %2315 = vdwg.mxu0
        %2316 = vmatpush.bf16.msra.mxu0 %v2237
        %2317 = vmatpush.bf16.msra.mxu0 %v2236
        %2318 = vmatpush.bf16.msra.mxu0 %v2235
        %2319 = vmatpush.bf16.msra.mxu0 %v2234
        %2320 = vmatpush.bf16.msra.mxu0 %v2233
        %2321 = vmatpush.bf16.msra.mxu0 %v2232
        %2322 = vmatpush.bf16.msra.mxu0 %v2231
        %2323 = vmatpush.bf16.msra.mxu0 %v2230
        %2324 = vmatmul.bf16.gmra.mxu0 %v2012
        %v2325 = vpop.f32.mrf.mxu0
        %v2326 = vadd.f32 %v2307, %v2325
        %v2327 = vpop.f32.mrf.mxu0
        %v2328 = vadd.f32 %v2309, %v2327
        %2329 = vmatmul.bf16.gmra.mxu0 %v2016
        %v2330 = vpop.f32.mrf.mxu0
        %v2331 = vadd.f32 %v2312, %v2330
        %v2332 = vpop.f32.mrf.mxu0
        %v2333 = vadd.f32 %v2314, %v2332
        %2334 = vdwg.mxu0
        %2335 = vmatpush.bf16.msra.mxu0 %v2245
        %2336 = vmatpush.bf16.msra.mxu0 %v2244
        %2337 = vmatpush.bf16.msra.mxu0 %v2243
        %2338 = vmatpush.bf16.msra.mxu0 %v2242
        %2339 = vmatpush.bf16.msra.mxu0 %v2241
        %2340 = vmatpush.bf16.msra.mxu0 %v2240
        %2341 = vmatpush.bf16.msra.mxu0 %v2239
        %2342 = vmatpush.bf16.msra.mxu0 %v2238
        %2343 = vmatmul.bf16.gmra.mxu0 %v2013
        %v2344 = vpop.f32.mrf.mxu0
        %v2345 = vadd.f32 %v2326, %v2344
        %v2346 = vpop.f32.mrf.mxu0
        %v2347 = vadd.f32 %v2328, %v2346
        %2348 = vmatmul.bf16.gmra.mxu0 %v2017
        %v2349 = vpop.f32.mrf.mxu0
        %v2350 = vadd.f32 %v2331, %v2349
        %v2351 = vpop.f32.mrf.mxu0
        %v2352 = vadd.f32 %v2333, %v2351
        %2353 = vdwg.mxu0
        %v2354 = vadd.f32 %v1478, %v2345
        %v2355 = vadd.f32 %v1479, %v2347
        %v2356 = vadd.f32 %v1480, %v2350
        %v2357 = vadd.f32 %v1481, %v2352
        %2358 = vst [vmem:[%s528] sm:$0xff] %v2354
        %2359 = vst [vmem:[%s528 + $0x8] sm:$0xff] %v2355
        %2360 = vst [vmem:[%s528 + $0x10] sm:$0xff] %v2356
        %2361 = vst [vmem:[%s528 + $0x18] sm:$0xff] %v2357
        %s2362 = sand.u32 %s297, 1
        %s2363 = scalar_lea.sflag [#allocation4], %s2362
        %s2364 = sand.u32 %s297, 1
        %s2365 = smul.addr %s2364, 32
        %s2366 = scalar_lea.vmem [#allocation14], %s2365
        // Predicated region
        $region97: #{tpu_custom_call.1} parent=67 // pred_check
          %p2367 = pneg %p307
        $region98: #{tpu_custom_call.1} parent=67 // pred_check_branch
          %2369 = sbr.rel (%p2367) target = $region100
        $region99: #{tpu_custom_call.1} parent=67 // pred_region
          %2371 = vsyncadd %s2363, 0
          %s2372 = smul.addr %s32, 4
          %s2373 = smul.addr %s2372, 8
          %s2374 = scalar_lea.hbm %s12, %s2373
          %s2375 = sshll.u32 %s2366, 4
          %s2376 = int_to_ptr.vmem [resolvable:$true] %s2375
          %s2377 = sshll.u32 %s2374, 4
          %s2378 = int_to_ptr.hbm [resolvable:$true] %s2377
          %2383 = dma.vmem_to_hbm [thread:$0]  %s2376, 512, %s2378, %s2363, 128, 128, 8
        $region100: #{tpu_custom_call.1} parent=67 // pred_fallthru
          _
      $region68: #{tpu_custom_call.1} parent=5 // pred_fallthru
        _
      %p2384 = scmp.le.s32.totalorder 2, %s27
      // Predicated region
      $region101: #{tpu_custom_call.1} parent=5 // pred_check
        %p2385 = pneg %p2384
      $region102: #{tpu_custom_call.1} parent=5 // pred_check_branch
        %2387 = sbr.rel (%p2385) target = $region104
      $region103: #{tpu_custom_call.1} parent=5 // pred_region
        %s2388 = ssub.s32 %s27, 2
        // Predicated region
        $region105: #{tpu_custom_call.1} parent=103 // pred_check
          %p2389 = pneg %p313
        $region106: #{tpu_custom_call.1} parent=103 // pred_check_branch
          %2391 = sbr.rel (%p2389) target = $region108
        $region107: #{tpu_custom_call.1} parent=103 // pred_region
          %s2392 = sand.u32 %s298, 1
          %s2393 = scalar_lea.sflag [#allocation4], %s2392
          %s2394 = sand.u32 %s298, 1
          %s2395 = smul.addr %s2394, 32
          %s2396 = scalar_lea.vmem [#allocation14], %s2395
          %2398 = dma.done %s2393, 512
        $region108: #{tpu_custom_call.1} parent=103 // pred_fallthru
          _
      $region104: #{tpu_custom_call.1} parent=5 // pred_fallthru
        _
    $region6: #{tpu_custom_call.1} parent=1 // loop_footer
      %s31 = sadd.s32 1, %s27
    $region7: #{tpu_custom_call.1} parent=1 // loop_footer_branch
      %26 = sbr.rel target = $region3
    $region8: #{tpu_custom_call.1} parent=1 // loop_exit
      _
    %2399 = vsyncpa [#allocation3], 1
    %s2400 = scalar_lea.sflag [#allocation3], 1
    %2401 = vsyncpa %s2400, 1
    %2402 = vsyncpa [#allocation6], 1
    %2403 = vsyncpa [#allocation9], 1
    %2404 = vsyncpa [#allocation12], 1
    %2405 = vsyncpa [#allocation4], 1
    %s2406 = scalar_lea.sflag [#allocation4], 1
    %2407 = vsyncpa %s2406, 1

</llo_original>
